<compile_context>
chip_gen: v7x
topology: tpu7x:2x2x1
jax: 0.10.0
libtpu: 0.0.40
codegen_flags: <defaults>
</compile_context>

<pallas_src>
import numpy as np
import jax
import jax.numpy as jnp
from jax.experimental import pallas as pl
from jax.experimental.pallas import tpu as pltpu


def _gelu(x):
    return jax.nn.gelu(x, approximate=True)


def _layernorm(v, g, b, eps=1e-5):
    # Fused single-pass statistics: var = E[x^2] - E[x]^2 (halves XLU reductions).
    m = jnp.mean(v, axis=-1, keepdims=True)
    m2 = jnp.mean(v * v, axis=-1, keepdims=True)
    var = m2 - m * m
    return (v - m) * jax.lax.rsqrt(var + eps) * g + b


# ----------------------------- Pallas kernel ------------------------------- #
def fourier_layer_kernel(x_ref, a_ref, c_ref, g1_ref, be1_ref, g2_ref, be2_ref,
                         w1_ref, b1_ref, w2_ref, b2_ref, o_ref):
    blk_b, T, D = x_ref.shape
    two_m = c_ref.shape[0]

    # Flatten (blk_b, T, D) -> (blk_b*T, D): LN / GeLU / FFN are row-wise, and
    # blk_b*T rows keep the MXU tiles and the [8,128] vregs busy.
    x = x_ref[...].astype(jnp.float32).reshape(blk_b * T, D)

    # --- LayerNorm 1 ---
    xln = _layernorm(x, g1_ref[0], be1_ref[0])

    # --- CausalSpecConv via rank-2M causal-Toeplitz factorization (MXU) ---
    # out_csc[t, d] = sum_j C[j, d] * (A[j] @ xln)[t, d]
    a = a_ref[...]           # (2M*T, T)  f32 shared causal Toeplitz stack
    c = c_ref[...]           # (2M, 1, D) f32 per-mode channel mixers
    csc_rows = []
    for b in range(blk_b):                                   # static, small unroll
        xb = xln[b * T:(b + 1) * T, :]                       # (T, D)
        yb = jnp.dot(a, xb, preferred_element_type=jnp.float32)   # (2M*T, D) f32 acc
        yb = yb.reshape(two_m, T, D)
        csc_rows.append(jnp.sum(c * yb, axis=0))             # (T, D)
    out_csc = jnp.concatenate(csc_rows, axis=0)              # (blk_b*T, D)

    # --- act + residual (f32 VPU/EUP math) ---
    y = _gelu(out_csc) + x

    # --- LayerNorm 2 ---
    yln = _layernorm(y, g2_ref[0], be2_ref[0])

    # --- FFN: Linear -> GeLU -> Linear (MXU), then residual ---
    # Weights arrive already in the matmul operand dtype (bf16 on v6e/v7x);
    # activations are cast to match, accumulation stays f32.
    w1 = w1_ref[...]
    w2 = w2_ref[...]
    h = jnp.dot(yln.astype(w1.dtype), w1,
                preferred_element_type=jnp.float32) + b1_ref[0]
    h = _gelu(h)
    z = jnp.dot(h.astype(w2.dtype), w2,
                preferred_element_type=jnp.float32) + b2_ref[0]

    o_ref[...] = (z + y).astype(o_ref.dtype).reshape(blk_b, T, D)


# ------------------------------- wrapper ------------------------------------ #
def fourier_layer(x, a_flat, c, g1, be1, g2, be2, w1, b1, w2, b2, *,
                  block_b=None, matmul_dtype=jnp.float32):
    B, T, D = x.shape
    I = w1.shape[1]
    two_m = c.shape[0]

    if block_b is None:
        block_b = B
    assert B % block_b == 0, "batch must be divisible by block_b"
    grid = (B // block_b,)

    # Cast the FFN weights to the MXU operand dtype (bf16 recommended on
    # v6e/v7x): halves weight DMA bytes & VMEM residency; f32 accumulation.
    w1 = w1.astype(matmul_dtype)
    w2 = w2.astype(matmul_dtype)

    def invariant(arr):
        # Grid-invariant operand: constant index_map + single buffer
        # (double-buffering an unchanging block only doubles VMEM).
        shape = arr.shape
        return pl.BlockSpec(shape, lambda i, _n=len(shape): (0,) * _n,
                            pipeline_mode=pl.Buffered(1))

    conv_flops = 2 * (two_m * T) * T * D + 2 * two_m * T * D
    ffn_flops = 4 * T * D * I
    misc_flops = 16 * T * D          # LN / GeLU poly / residuals (rough)
    cost = pl.CostEstimate(
        flops=int(B * (conv_flops + ffn_flops + misc_flops)),
        transcendentals=int(B * T * (D + I)),   # two tanh-GeLUs
        bytes_accessed=int(
            2 * B * T * D * x.dtype.itemsize
            + a_flat.size * a_flat.dtype.itemsize
            + c.size * c.dtype.itemsize
            + (w1.size + w2.size) * w1.dtype.itemsize
            + (g1.size + be1.size + g2.size + be2.size
               + b1.size + b2.size) * 4),
    )

    return pl.pallas_call(
        fourier_layer_kernel,
        out_shape=jax.ShapeDtypeStruct((B, T, D), x.dtype),
        grid_spec=pltpu.PrefetchScalarGridSpec(
            num_scalar_prefetch=0,
            grid=grid,
            in_specs=[
                pl.BlockSpec((block_b, T, D), lambda i: (i, 0, 0)),   # x
                invariant(a_flat),                                     # Toeplitz stack
                invariant(c),                                          # channel mixers
                invariant(g1), invariant(be1),                         # ln1
                invariant(g2), invariant(be2),                         # ln2
                invariant(w1), invariant(b1),                          # fc1
                invariant(w2), invariant(b2),                          # fc2
            ],
            out_specs=pl.BlockSpec((block_b, T, D), lambda i: (i, 0, 0)),
        ),
        compiler_params=pltpu.CompilerParams(
            dimension_semantics=("parallel",),
            vmem_limit_bytes=32 * 1024 * 1024,   # explicit budget (fits v7x 64 MiB)
        ),
        cost_estimate=cost,
    )(x, a_flat, c, g1, be1, g2, be2, w1, b1, w2, b2)


# ------------------------- parameter construction -------------------------- #
def build_params(hidden, n_modes, T, seed=0):
    rng = np.random.default_rng(seed)

    # truncated DFT matrix (get_dft_matrix semantics): (n_modes, T+1)
    time_idx = np.arange(1, T + 2, dtype=np.float64)
    mode_idx = np.arange(0, n_modes, dtype=np.float64)
    full_idx = np.outer(mode_idx, time_idx)
    W = np.exp(1j * 2 * np.pi * full_idx / T)
    W[:, -1] = W[:, -2]

    # idft_exps (constructor argument): deterministic complex vector (n_modes,)
    m = np.arange(n_modes, dtype=np.float64)
    idft_exps = (1.0 / T) * np.exp(-1j * 2 * np.pi * m * (T - 1) / T)

    # spectral mixing weights: (n_modes, n_modes, hidden), complex
    weights = (rng.standard_normal((n_modes, n_modes, hidden))
               + 1j * rng.standard_normal((n_modes, n_modes, hidden))) / n_modes

    # LayerNorm params (PyTorch default init)
    g1 = np.ones(hidden); be1 = np.zeros(hidden)
    g2 = np.ones(hidden); be2 = np.zeros(hidden)

    # FFN params (intermediate_size == hidden_size in FourierLayer)
    w1 = 0.1 * rng.standard_normal((hidden, hidden))
    b1 = 0.1 * rng.standard_normal(hidden)
    w2 = 0.1 * rng.standard_normal((hidden, hidden))
    b2 = 0.1 * rng.standard_normal(hidden)

    # ---- rank-2M factorization of the causal spectral conv ----
    # out_csc[t,d] = sum_{s<=t} Re( sum_m W[m,t-s] * wmix[m,d] ) * xln[s,d]
    #             = sum_j C[j,d] * (A[j] @ xln)[t,d]
    # with A = [Re(P_m); Im(P_m)] (2M shared causal (T,T) Toeplitz matrices)
    # and  C = [Re(wmix); -Im(wmix)] (2M per-channel mixing vectors).
    wmix = np.einsum('mnd,n->md', weights, idft_exps)            # (M, D) complex
    lag = np.arange(T)[:, None] - np.arange(T)[None, :]          # (T, T)
    causal = lag >= 0
    Wlag = W[:, np.clip(lag, 0, T - 1)]                          # (M, T, T)
    Wlag = np.where(causal[None, :, :], Wlag, 0.0)
    a_flat = np.concatenate([Wlag.real, Wlag.imag], axis=0)      # (2M, T, T)
    a_flat = a_flat.reshape(2 * n_modes * T, T)
    c = np.concatenate([wmix.real, -wmix.imag], axis=0)[:, None, :]  # (2M, 1, D)

    return dict(W=W, weights=weights, idft_exps=idft_exps,
                g1=g1, be1=be1, g2=g2, be2=be2,
                w1=w1, b1=b1, w2=w2, b2=b2,
                a_flat=a_flat, c=c)


# ------------------- pure-numpy reference (PyTorch math) ------------------- #
def reference_forward(x, p, T):
    x = np.asarray(x, np.float64)

    def ln(v, g, b):
        mu = v.mean(-1, keepdims=True)
        var = ((v - mu) ** 2).mean(-1, keepdims=True)
        return (v - mu) / np.sqrt(var + 1e-5) * g + b

    def gelu(v):
        cst = np.sqrt(2.0 / np.pi)
        return 0.5 * v * (1.0 + np.tanh(cst * (v + 0.044715 * v ** 3)))

    resid = x
    xln = ln(x, p['g1'], p['be1'])

    # CausalSpecConv exactly as in the PyTorch forward (prev_x = prev_x_ft = 0)
    B, _, D = x.shape
    W = p['W']; weights = p['weights']; idft_exps = p['idft_exps']
    M = W.shape[0]
    prev_x = np.zeros_like(xln)
    prev_x_ft = np.zeros((B, M, D), dtype=np.complex128)
    x_cat = np.concatenate([prev_x, xln], axis=-2)
    w = W.reshape(1, M, 1, -1)
    f = (-x_cat[:, :T, :] + x_cat[:, T:2 * T, :]).transpose(0, 2, 1)[:, None, :, :]
    f = np.broadcast_to(f, (B, M, D, T)).astype(np.complex128)
    f = np.concatenate([prev_x_ft[..., None], f], axis=-1)
    n = 2 * (T + 1) - 1
    prod = np.fft.fft(f, n=n, axis=-1) * np.fft.fft(w, n=n, axis=-1)
    x_stft = np.fft.ifft(prod, n=n, axis=-1)[..., 1:T + 1]
    x_stft = x_stft.transpose(0, 3, 1, 2)                        # (B, T, M, D)
    mixed = np.einsum('btmd,mnd->btnd', x_stft, weights)
    out_csc = np.real(np.einsum('btnd,n->btd', mixed, idft_exps))

    y = gelu(out_csc) + resid
    yln = ln(y, p['g2'], p['be2'])
    h = gelu(yln @ p['w1'] + p['b1'])
    z = h @ p['w2'] + p['b2']
    return z + y


# ----------------------------------- main ----------------------------------- #
if __name__ == "__main__":
    # n_modes <= (T + 1) // 2 ; hidden = 128 keeps the lane dimension dense.
    B, T, D, M = 8, 8, 128, 4

    p = build_params(D, M, T, seed=0)

    key = jax.random.PRNGKey(0)
    x = jax.random.normal(key, (B, T, D), dtype=jnp.float32)

    f32 = lambda a: jnp.asarray(a, dtype=jnp.float32)
    args = dict(
        a_flat=f32(p['a_flat']), c=f32(p['c']),
        g1=f32(p['g1'].reshape(1, D)), be1=f32(p['be1'].reshape(1, D)),
        g2=f32(p['g2'].reshape(1, D)), be2=f32(p['be2'].reshape(1, D)),
        w1=f32(p['w1']), b1=f32(p['b1'].reshape(1, D)),
        w2=f32(p['w2']), b2=f32(p['b2'].reshape(1, D)),
    )

    ref = reference_forward(np.asarray(x), p, T)

    # 1) f32 matmul operands: exact path, tight tolerance.
    out_f32 = jax.block_until_ready(
        fourier_layer(x, **args, block_b=4, matmul_dtype=jnp.float32))
    np.testing.assert_allclose(np.asarray(out_f32), ref, rtol=2e-3, atol=2e-3)

    # 2) bf16 FFN matmul operands (recommended on v6e/v7x), f32 accumulation.
    #    Tolerance is looser because weights/activations are rounded to bf16.
    out_bf16 = jax.block_until_ready(
        fourier_layer(x, **args, block_b=4, matmul_dtype=jnp.bfloat16))
    np.testing.assert_allclose(np.asarray(out_bf16), ref, rtol=1e-1, atol=2e-1)

    print("KERNEL_OK")
</pallas_src>

<mosaic_0001>
module attributes {stable_mosaic.version = 11 : i64} {
  func.func @fourier_layer_kernel(%arg0: i32, %arg1: memref<4x8x128xf32, #tpu.memory_space<vmem>>, %arg2: memref<64x8xf32, #tpu.memory_space<vmem>>, %arg3: memref<8x1x128xf32, #tpu.memory_space<vmem>>, %arg4: memref<1x128xf32, #tpu.memory_space<vmem>>, %arg5: memref<1x128xf32, #tpu.memory_space<vmem>>, %arg6: memref<1x128xf32, #tpu.memory_space<vmem>>, %arg7: memref<1x128xf32, #tpu.memory_space<vmem>>, %arg8: memref<128x128xf32, #tpu.memory_space<vmem>>, %arg9: memref<1x128xf32, #tpu.memory_space<vmem>>, %arg10: memref<128x128xf32, #tpu.memory_space<vmem>>, %arg11: memref<1x128xf32, #tpu.memory_space<vmem>>, %arg12: memref<4x8x128xf32, #tpu.memory_space<vmem>>) attributes {dimension_semantics = [#tpu.dimension_semantics<parallel>], iteration_bounds = array<i64: 2>, scalar_prefetch = 0 : i64, scratch_operands = 0 : i64, tpu.core_type = #tpu.core_type<tc>, window_params = [{transform_indices = @transform_0, window_bounds = array<i64: 4, 8, 128>}, {pipeline_mode = #tpu.pipeline_mode<synchronous>, transform_indices = @transform_1, window_bounds = array<i64: 64, 8>}, {pipeline_mode = #tpu.pipeline_mode<synchronous>, transform_indices = @transform_2, window_bounds = array<i64: 8, 1, 128>}, {pipeline_mode = #tpu.pipeline_mode<synchronous>, transform_indices = @transform_3, window_bounds = array<i64: 1, 128>}, {pipeline_mode = #tpu.pipeline_mode<synchronous>, transform_indices = @transform_4, window_bounds = array<i64: 1, 128>}, {pipeline_mode = #tpu.pipeline_mode<synchronous>, transform_indices = @transform_5, window_bounds = array<i64: 1, 128>}, {pipeline_mode = #tpu.pipeline_mode<synchronous>, transform_indices = @transform_6, window_bounds = array<i64: 1, 128>}, {pipeline_mode = #tpu.pipeline_mode<synchronous>, transform_indices = @transform_7, window_bounds = array<i64: 128, 128>}, {pipeline_mode = #tpu.pipeline_mode<synchronous>, transform_indices = @transform_8, window_bounds = array<i64: 1, 128>}, {pipeline_mode = #tpu.pipeline_mode<synchronous>, transform_indices = @transform_9, window_bounds = array<i64: 128, 128>}, {pipeline_mode = #tpu.pipeline_mode<synchronous>, transform_indices = @transform_10, window_bounds = array<i64: 1, 128>}, {transform_indices = @transform_11, window_bounds = array<i64: 4, 8, 128>}]} {
    %c0 = arith.constant 0 : index
    %c0_0 = arith.constant 0 : index
    %c0_1 = arith.constant 0 : index
    %0 = vector.load %arg1[%c0, %c0_0, %c0_1] : memref<4x8x128xf32, #tpu.memory_space<vmem>>, vector<4x8x128xf32>
    %1 = vector.shape_cast %0 : vector<4x8x128xf32> to vector<32x128xf32>
    %c0_2 = arith.constant 0 : index
    %c0_3 = arith.constant 0 : index
    %2 = vector.load %arg4[%c0_2, %c0_3] : memref<1x128xf32, #tpu.memory_space<vmem>>, vector<1x128xf32>
    %3 = vector.shape_cast %2 : vector<1x128xf32> to vector<128xf32>
    %c0_4 = arith.constant 0 : index
    %c0_5 = arith.constant 0 : index
    %4 = vector.load %arg5[%c0_4, %c0_5] : memref<1x128xf32, #tpu.memory_space<vmem>>, vector<1x128xf32>
    %5 = vector.shape_cast %4 : vector<1x128xf32> to vector<128xf32>
    %cst = arith.constant dense<0.000000e+00> : vector<32xf32>
    %6 = vector.multi_reduction <add>, %1, %cst [1] : vector<32x128xf32> to vector<32xf32>
    %7 = vector.shape_cast %6 : vector<32xf32> to vector<32x1xf32>
    %cst_6 = arith.constant 1.280000e+02 : f32
    %8 = vector.broadcast %cst_6 : f32 to vector<32x1xf32>
    %9 = arith.divf %7, %8 : vector<32x1xf32>
    %10 = arith.mulf %1, %1 : vector<32x128xf32>
    %cst_7 = arith.constant dense<0.000000e+00> : vector<32xf32>
    %11 = vector.multi_reduction <add>, %10, %cst_7 [1] : vector<32x128xf32> to vector<32xf32>
    %12 = vector.shape_cast %11 : vector<32xf32> to vector<32x1xf32>
    %cst_8 = arith.constant 1.280000e+02 : f32
    %13 = vector.broadcast %cst_8 : f32 to vector<32x1xf32>
    %14 = arith.divf %12, %13 : vector<32x1xf32>
    %15 = arith.mulf %9, %9 : vector<32x1xf32>
    %16 = arith.subf %14, %15 : vector<32x1xf32>
    %17 = vector.broadcast %9 : vector<32x1xf32> to vector<32x128xf32>
    %18 = arith.subf %1, %17 : vector<32x128xf32>
    %cst_9 = arith.constant 9.99999974E-6 : f32
    %19 = vector.broadcast %cst_9 : f32 to vector<32x1xf32>
    %20 = arith.addf %16, %19 : vector<32x1xf32>
    %21 = math.rsqrt %20 : vector<32x1xf32>
    %22 = vector.broadcast %21 : vector<32x1xf32> to vector<32x128xf32>
    %23 = arith.mulf %18, %22 : vector<32x128xf32>
    %24 = vector.shape_cast %3 : vector<128xf32> to vector<1x128xf32>
    %25 = vector.broadcast %24 : vector<1x128xf32> to vector<32x128xf32>
    %26 = arith.mulf %23, %25 : vector<32x128xf32>
    %27 = vector.shape_cast %5 : vector<128xf32> to vector<1x128xf32>
    %28 = vector.broadcast %27 : vector<1x128xf32> to vector<32x128xf32>
    %29 = arith.addf %26, %28 : vector<32x128xf32>
    %c0_10 = arith.constant 0 : index
    %c0_11 = arith.constant 0 : index
    %30 = vector.load %arg2[%c0_10, %c0_11] : memref<64x8xf32, #tpu.memory_space<vmem>>, vector<64x8xf32>
    %c0_12 = arith.constant 0 : index
    %c0_13 = arith.constant 0 : index
    %c0_14 = arith.constant 0 : index
    %31 = vector.load %arg3[%c0_12, %c0_13, %c0_14] : memref<8x1x128xf32, #tpu.memory_space<vmem>>, vector<8x1x128xf32>
    %32 = vector.extract_strided_slice %29 {offsets = [0, 0], sizes = [8, 128], strides = [1, 1]} : vector<32x128xf32> to vector<8x128xf32>
    %cst_15 = arith.constant dense<0.000000e+00> : vector<64x128xf32>
    %33 = tpu.matmul %30, %32, %cst_15 {dimension_numbers = #tpu.dot_dimension_numbers<[1], [0], [0], [1], [0, 0, 1, 1], [], []>} : vector<64x8xf32>, vector<8x128xf32>, vector<64x128xf32> -> vector<64x128xf32>
    %34 = vector.shape_cast %33 : vector<64x128xf32> to vector<8x8x128xf32>
    %35 = vector.broadcast %31 : vector<8x1x128xf32> to vector<8x8x128xf32>
    %36 = arith.mulf %35, %34 : vector<8x8x128xf32>
    %cst_16 = arith.constant dense<0.000000e+00> : vector<8x128xf32>
    %37 = vector.multi_reduction <add>, %36, %cst_16 [0] : vector<8x8x128xf32> to vector<8x128xf32>
    %38 = vector.extract_strided_slice %29 {offsets = [8, 0], sizes = [8, 128], strides = [1, 1]} : vector<32x128xf32> to vector<8x128xf32>
    %cst_17 = arith.constant dense<0.000000e+00> : vector<64x128xf32>
    %39 = tpu.matmul %30, %38, %cst_17 {dimension_numbers = #tpu.dot_dimension_numbers<[1], [0], [0], [1], [0, 0, 1, 1], [], []>} : vector<64x8xf32>, vector<8x128xf32>, vector<64x128xf32> -> vector<64x128xf32>
    %40 = vector.shape_cast %39 : vector<64x128xf32> to vector<8x8x128xf32>
    %41 = vector.broadcast %31 : vector<8x1x128xf32> to vector<8x8x128xf32>
    %42 = arith.mulf %41, %40 : vector<8x8x128xf32>
    %cst_18 = arith.constant dense<0.000000e+00> : vector<8x128xf32>
    %43 = vector.multi_reduction <add>, %42, %cst_18 [0] : vector<8x8x128xf32> to vector<8x128xf32>
    %44 = vector.extract_strided_slice %29 {offsets = [16, 0], sizes = [8, 128], strides = [1, 1]} : vector<32x128xf32> to vector<8x128xf32>
    %cst_19 = arith.constant dense<0.000000e+00> : vector<64x128xf32>
    %45 = tpu.matmul %30, %44, %cst_19 {dimension_numbers = #tpu.dot_dimension_numbers<[1], [0], [0], [1], [0, 0, 1, 1], [], []>} : vector<64x8xf32>, vector<8x128xf32>, vector<64x128xf32> -> vector<64x128xf32>
    %46 = vector.shape_cast %45 : vector<64x128xf32> to vector<8x8x128xf32>
    %47 = vector.broadcast %31 : vector<8x1x128xf32> to vector<8x8x128xf32>
    %48 = arith.mulf %47, %46 : vector<8x8x128xf32>
    %cst_20 = arith.constant dense<0.000000e+00> : vector<8x128xf32>
    %49 = vector.multi_reduction <add>, %48, %cst_20 [0] : vector<8x8x128xf32> to vector<8x128xf32>
    %50 = vector.extract_strided_slice %29 {offsets = [24, 0], sizes = [8, 128], strides = [1, 1]} : vector<32x128xf32> to vector<8x128xf32>
    %cst_21 = arith.constant dense<0.000000e+00> : vector<64x128xf32>
    %51 = tpu.matmul %30, %50, %cst_21 {dimension_numbers = #tpu.dot_dimension_numbers<[1], [0], [0], [1], [0, 0, 1, 1], [], []>} : vector<64x8xf32>, vector<8x128xf32>, vector<64x128xf32> -> vector<64x128xf32>
    %52 = vector.shape_cast %51 : vector<64x128xf32> to vector<8x8x128xf32>
    %53 = vector.broadcast %31 : vector<8x1x128xf32> to vector<8x8x128xf32>
    %54 = arith.mulf %53, %52 : vector<8x8x128xf32>
    %cst_22 = arith.constant dense<0.000000e+00> : vector<8x128xf32>
    %55 = vector.multi_reduction <add>, %54, %cst_22 [0] : vector<8x8x128xf32> to vector<8x128xf32>
    %56 = tpu.concatenate %37, %43, %49, %55 in 0 : vector<8x128xf32>, vector<8x128xf32>, vector<8x128xf32>, vector<8x128xf32> -> vector<32x128xf32>
    %57 = arith.mulf %56, %56 : vector<32x128xf32>
    %58 = arith.mulf %56, %57 : vector<32x128xf32>
    %cst_23 = arith.constant 4.471500e-02 : f32
    %59 = vector.broadcast %cst_23 : f32 to vector<32x128xf32>
    %60 = arith.mulf %59, %58 : vector<32x128xf32>
    %61 = arith.addf %56, %60 : vector<32x128xf32>
    %cst_24 = arith.constant 0.797884583 : f32
    %62 = vector.broadcast %cst_24 : f32 to vector<32x128xf32>
    %63 = arith.mulf %62, %61 : vector<32x128xf32>
    %64 = math.tanh %63 : vector<32x128xf32>
    %cst_25 = arith.constant 1.000000e+00 : f32
    %65 = vector.broadcast %cst_25 : f32 to vector<32x128xf32>
    %66 = arith.addf %65, %64 : vector<32x128xf32>
    %cst_26 = arith.constant 5.000000e-01 : f32
    %67 = vector.broadcast %cst_26 : f32 to vector<32x128xf32>
    %68 = arith.mulf %67, %66 : vector<32x128xf32>
    %69 = arith.mulf %56, %68 : vector<32x128xf32>
    %70 = arith.addf %69, %1 : vector<32x128xf32>
    %c0_27 = arith.constant 0 : index
    %c0_28 = arith.constant 0 : index
    %71 = vector.load %arg6[%c0_27, %c0_28] : memref<1x128xf32, #tpu.memory_space<vmem>>, vector<1x128xf32>
    %72 = vector.shape_cast %71 : vector<1x128xf32> to vector<128xf32>
    %c0_29 = arith.constant 0 : index
    %c0_30 = arith.constant 0 : index
    %73 = vector.load %arg7[%c0_29, %c0_30] : memref<1x128xf32, #tpu.memory_space<vmem>>, vector<1x128xf32>
    %74 = vector.shape_cast %73 : vector<1x128xf32> to vector<128xf32>
    %cst_31 = arith.constant dense<0.000000e+00> : vector<32xf32>
    %75 = vector.multi_reduction <add>, %70, %cst_31 [1] : vector<32x128xf32> to vector<32xf32>
    %76 = vector.shape_cast %75 : vector<32xf32> to vector<32x1xf32>
    %cst_32 = arith.constant 1.280000e+02 : f32
    %77 = vector.broadcast %cst_32 : f32 to vector<32x1xf32>
    %78 = arith.divf %76, %77 : vector<32x1xf32>
    %79 = arith.mulf %70, %70 : vector<32x128xf32>
    %cst_33 = arith.constant dense<0.000000e+00> : vector<32xf32>
    %80 = vector.multi_reduction <add>, %79, %cst_33 [1] : vector<32x128xf32> to vector<32xf32>
    %81 = vector.shape_cast %80 : vector<32xf32> to vector<32x1xf32>
    %cst_34 = arith.constant 1.280000e+02 : f32
    %82 = vector.broadcast %cst_34 : f32 to vector<32x1xf32>
    %83 = arith.divf %81, %82 : vector<32x1xf32>
    %84 = arith.mulf %78, %78 : vector<32x1xf32>
    %85 = arith.subf %83, %84 : vector<32x1xf32>
    %86 = vector.broadcast %78 : vector<32x1xf32> to vector<32x128xf32>
    %87 = arith.subf %70, %86 : vector<32x128xf32>
    %cst_35 = arith.constant 9.99999974E-6 : f32
    %88 = vector.broadcast %cst_35 : f32 to vector<32x1xf32>
    %89 = arith.addf %85, %88 : vector<32x1xf32>
    %90 = math.rsqrt %89 : vector<32x1xf32>
    %91 = vector.broadcast %90 : vector<32x1xf32> to vector<32x128xf32>
    %92 = arith.mulf %87, %91 : vector<32x128xf32>
    %93 = vector.shape_cast %72 : vector<128xf32> to vector<1x128xf32>
    %94 = vector.broadcast %93 : vector<1x128xf32> to vector<32x128xf32>
    %95 = arith.mulf %92, %94 : vector<32x128xf32>
    %96 = vector.shape_cast %74 : vector<128xf32> to vector<1x128xf32>
    %97 = vector.broadcast %96 : vector<1x128xf32> to vector<32x128xf32>
    %98 = arith.addf %95, %97 : vector<32x128xf32>
    %c0_36 = arith.constant 0 : index
    %c0_37 = arith.constant 0 : index
    %99 = vector.load %arg8[%c0_36, %c0_37] : memref<128x128xf32, #tpu.memory_space<vmem>>, vector<128x128xf32>
    %c0_38 = arith.constant 0 : index
    %c0_39 = arith.constant 0 : index
    %100 = vector.load %arg10[%c0_38, %c0_39] : memref<128x128xf32, #tpu.memory_space<vmem>>, vector<128x128xf32>
    %cst_40 = arith.constant dense<0.000000e+00> : vector<32x128xf32>
    %101 = tpu.matmul %98, %99, %cst_40 {dimension_numbers = #tpu.dot_dimension_numbers<[1], [0], [0], [1], [0, 0, 1, 1], [], []>} : vector<32x128xf32>, vector<128x128xf32>, vector<32x128xf32> -> vector<32x128xf32>
    %c0_41 = arith.constant 0 : index
    %c0_42 = arith.constant 0 : index
    %102 = vector.load %arg9[%c0_41, %c0_42] : memref<1x128xf32, #tpu.memory_space<vmem>>, vector<1x128xf32>
    %103 = vector.shape_cast %102 : vector<1x128xf32> to vector<128xf32>
    %104 = vector.shape_cast %103 : vector<128xf32> to vector<1x128xf32>
    %105 = vector.broadcast %104 : vector<1x128xf32> to vector<32x128xf32>
    %106 = arith.addf %101, %105 : vector<32x128xf32>
    %107 = arith.mulf %106, %106 : vector<32x128xf32>
    %108 = arith.mulf %106, %107 : vector<32x128xf32>
    %cst_43 = arith.constant 4.471500e-02 : f32
    %109 = vector.broadcast %cst_43 : f32 to vector<32x128xf32>
    %110 = arith.mulf %109, %108 : vector<32x128xf32>
    %111 = arith.addf %106, %110 : vector<32x128xf32>
    %cst_44 = arith.constant 0.797884583 : f32
    %112 = vector.broadcast %cst_44 : f32 to vector<32x128xf32>
    %113 = arith.mulf %112, %111 : vector<32x128xf32>
    %114 = math.tanh %113 : vector<32x128xf32>
    %cst_45 = arith.constant 1.000000e+00 : f32
    %115 = vector.broadcast %cst_45 : f32 to vector<32x128xf32>
    %116 = arith.addf %115, %114 : vector<32x128xf32>
    %cst_46 = arith.constant 5.000000e-01 : f32
    %117 = vector.broadcast %cst_46 : f32 to vector<32x128xf32>
    %118 = arith.mulf %117, %116 : vector<32x128xf32>
    %119 = arith.mulf %106, %118 : vector<32x128xf32>
    %cst_47 = arith.constant dense<0.000000e+00> : vector<32x128xf32>
    %120 = tpu.matmul %119, %100, %cst_47 {dimension_numbers = #tpu.dot_dimension_numbers<[1], [0], [0], [1], [0, 0, 1, 1], [], []>} : vector<32x128xf32>, vector<128x128xf32>, vector<32x128xf32> -> vector<32x128xf32>
    %c0_48 = arith.constant 0 : index
    %c0_49 = arith.constant 0 : index
    %121 = vector.load %arg11[%c0_48, %c0_49] : memref<1x128xf32, #tpu.memory_space<vmem>>, vector<1x128xf32>
    %122 = vector.shape_cast %121 : vector<1x128xf32> to vector<128xf32>
    %123 = vector.shape_cast %122 : vector<128xf32> to vector<1x128xf32>
    %124 = vector.broadcast %123 : vector<1x128xf32> to vector<32x128xf32>
    %125 = arith.addf %120, %124 : vector<32x128xf32>
    %126 = arith.addf %125, %70 : vector<32x128xf32>
    %127 = vector.shape_cast %126 : vector<32x128xf32> to vector<4x8x128xf32>
    %c0_50 = arith.constant 0 : index
    %c0_51 = arith.constant 0 : index
    %c0_52 = arith.constant 0 : index
    %128 = vector.load %arg12[%c0_50, %c0_51, %c0_52] : memref<4x8x128xf32, #tpu.memory_space<vmem>>, vector<4x8x128xf32>
    tpu.vector_store %arg12[%c0_50, %c0_51, %c0_52], %127 {strides = array<i32>} : memref<4x8x128xf32, #tpu.memory_space<vmem>>, vector<4x8x128xf32>,
    return
  }
  func.func @transform_0(%arg0: i32) -> (i32, i32, i32) {
    %c0_i32 = arith.constant 0 : i32
    %c0_i32_0 = arith.constant 0 : i32
    %c0_i32_1 = arith.constant 0 : i32
    return %arg0, %c0_i32, %c0_i32_0 : i32, i32, i32
  }
  func.func @transform_1(%arg0: i32) -> (i32, i32) {
    %c0_i32 = arith.constant 0 : i32
    %c0_i32_0 = arith.constant 0 : i32
    %c0_i32_1 = arith.constant 0 : i32
    return %c0_i32, %c0_i32_0 : i32, i32
  }
  func.func @transform_2(%arg0: i32) -> (i32, i32, i32) {
    %c0_i32 = arith.constant 0 : i32
    %c0_i32_0 = arith.constant 0 : i32
    %c0_i32_1 = arith.constant 0 : i32
    %c0_i32_2 = arith.constant 0 : i32
    return %c0_i32, %c0_i32_0, %c0_i32_1 : i32, i32, i32
  }
  func.func @transform_3(%arg0: i32) -> (i32, i32) {
    %c0_i32 = arith.constant 0 : i32
    %c0_i32_0 = arith.constant 0 : i32
    %c0_i32_1 = arith.constant 0 : i32
    return %c0_i32, %c0_i32_0 : i32, i32
  }
  func.func @transform_4(%arg0: i32) -> (i32, i32) {
    %c0_i32 = arith.constant 0 : i32
    %c0_i32_0 = arith.constant 0 : i32
    %c0_i32_1 = arith.constant 0 : i32
    return %c0_i32, %c0_i32_0 : i32, i32
  }
  func.func @transform_5(%arg0: i32) -> (i32, i32) {
    %c0_i32 = arith.constant 0 : i32
    %c0_i32_0 = arith.constant 0 : i32
    %c0_i32_1 = arith.constant 0 : i32
    return %c0_i32, %c0_i32_0 : i32, i32
  }
  func.func @transform_6(%arg0: i32) -> (i32, i32) {
    %c0_i32 = arith.constant 0 : i32
    %c0_i32_0 = arith.constant 0 : i32
    %c0_i32_1 = arith.constant 0 : i32
    return %c0_i32, %c0_i32_0 : i32, i32
  }
  func.func @transform_7(%arg0: i32) -> (i32, i32) {
    %c0_i32 = arith.constant 0 : i32
    %c0_i32_0 = arith.constant 0 : i32
    %c0_i32_1 = arith.constant 0 : i32
    return %c0_i32, %c0_i32_0 : i32, i32
  }
  func.func @transform_8(%arg0: i32) -> (i32, i32) {
    %c0_i32 = arith.constant 0 : i32
    %c0_i32_0 = arith.constant 0 : i32
    %c0_i32_1 = arith.constant 0 : i32
    return %c0_i32, %c0_i32_0 : i32, i32
  }
  func.func @transform_9(%arg0: i32) -> (i32, i32) {
    %c0_i32 = arith.constant 0 : i32
    %c0_i32_0 = arith.constant 0 : i32
    %c0_i32_1 = arith.constant 0 : i32
    return %c0_i32, %c0_i32_0 : i32, i32
  }
  func.func @transform_10(%arg0: i32) -> (i32, i32) {
    %c0_i32 = arith.constant 0 : i32
    %c0_i32_0 = arith.constant 0 : i32
    %c0_i32_1 = arith.constant 0 : i32
    return %c0_i32, %c0_i32_0 : i32, i32
  }
  func.func @transform_11(%arg0: i32) -> (i32, i32, i32) {
    %c0_i32 = arith.constant 0 : i32
    %c0_i32_0 = arith.constant 0 : i32
    %c0_i32_1 = arith.constant 0 : i32
    return %arg0, %c0_i32, %c0_i32_0 : i32, i32, i32
  }
}

</mosaic_0001>

<llo_original>
// kernel: tpu_custom_call.1
$region0: #{tpu_custom_call.1}
  #allocation0 [shape = 'u32[]', space=smem, size = 0x4, offset = 0x4, fixed_abs, tag = 'smem constant byte address 0x4 - core index']
  #allocation1 [shape = 'u32[144,128]{1,0:T(1,128)}', space=vmem, size = 0x12000, scoped, tag = 'internal scratch']
  %s0 = inlined_call_operand.vmem [shape: f32[8,8,128], index: 0, kind: input, shape index: {}]
  %s1 = inlined_call_operand.vmem [shape: f32[64,8], index: 1, kind: input, shape index: {}]
  %s2 = inlined_call_operand.vmem [shape: f32[8,1,128], index: 2, kind: input, shape index: {}]
  %s3 = inlined_call_operand.vmem [shape: f32[1,128], index: 3, kind: input, shape index: {}]
  %s4 = inlined_call_operand.vmem [shape: f32[1,128], index: 4, kind: input, shape index: {}]
  %s5 = inlined_call_operand.vmem [shape: f32[1,128], index: 5, kind: input, shape index: {}]
  %s6 = inlined_call_operand.vmem [shape: f32[1,128], index: 6, kind: input, shape index: {}]
  %s7 = inlined_call_operand.hbm [shape: f32[128,128], index: 7, kind: input, shape index: {}]
  %s8 = inlined_call_operand.vmem [shape: f32[1,128], index: 8, kind: input, shape index: {}]
  %s9 = inlined_call_operand.hbm [shape: f32[128,128], index: 9, kind: input, shape index: {}]
  %s10 = inlined_call_operand.vmem [shape: f32[1,128], index: 10, kind: input, shape index: {}]
  %s11 = inlined_call_operand.hbm [shape: f32[8,8,128], index: 11, kind: output, shape index: {}]
  %s12 = sld [smem:[#allocation0]]
  $region85: #{tpu_custom_call.1} parent=0
    _
  %s14 = ssub.s32 1, %s12
  %s15 = scalar_select 0, %s14, %s12
  $region1: #{tpu_custom_call.1} parent=0
    #allocation2 [shape = 'u8[65536]{0}', space=vmem, size = 0x10000, scoped, tag = 'input window, operand 7, single buffered']
    #allocation3 [shape = 's32[2]{0}', space=sflag, size = 0x8, scoped, tag = 'scoped memory for tpu_custom_call.1']
    #allocation4 [shape = 's32[2]{0}', space=sflag, size = 0x8, scoped, tag = 'scoped memory for tpu_custom_call.1']
    #allocation5 [shape = 'u8[65536]{0}', space=vmem, size = 0x10000, scoped, tag = 'input window, operand 9, single buffered']
    #allocation6 [shape = 's32[1]{0}', space=sflag, size = 0x4, scoped, tag = 'scoped memory for tpu_custom_call.1']
    #allocation7 [shape = 'u8[32768]{0}', space=vmem, size = 0x8000, scoped, tag = 'output window, operand 0']
    %16 = vsyncpa [#allocation3], 0
    %17 = vsyncpa [#allocation6], 0
    %18 = vsyncpa [#allocation4], 0
    %s19 = scalar_lea.sflag [#allocation4], 1
    %20 = vsyncpa %s19, 0
    loop: start=0, step=1, limit=4
    $region2: #{tpu_custom_call.1} parent=1 // loop_pre_header
      _
    $region3: #{tpu_custom_call.1} parent=1 // loop_header
      %s22 = sphi 0, %s26
      %p23 = scmp.ge.s32.totalorder %s22, 4
      %s32 = sphi 0, %s34
      %s35 = sphi 0, %s32
      %s36 = sphi 0, %s35
      %s52 = sphi 0, %s36
      %s56 = sphi 0, %s56
      %s58 = sphi 0, %s56
      %s59 = sphi 0, %s58
      %s73 = sphi 0, %s59
      %s77 = sphi 0, %s77
      %s79 = sphi 0, %s77
      %s80 = sphi 0, %s79
      %s94 = sphi 0, %s80
      %s98 = sphi 0, %s98
      %s100 = sphi 0, %s98
      %s101 = sphi 0, %s100
      %s115 = sphi 0, %s101
      %s119 = sphi 0, %s119
      %s121 = sphi 0, %s119
      %s122 = sphi 0, %s121
      %s136 = sphi 0, %s122
      %s140 = sphi 0, %s140
      %s142 = sphi 0, %s140
      %s143 = sphi 0, %s142
      %s157 = sphi 0, %s143
      %s161 = sphi 0, %s161
      %s163 = sphi 0, %s161
      %s164 = sphi 0, %s163
      %s178 = sphi 0, %s164
      %s182 = sphi 0, %s182
      %s184 = sphi 0, %s182
      %s185 = sphi 0, %s184
      %s199 = sphi 0, %s185
      %s203 = sphi 0, %s203
      %s205 = sphi 0, %s203
      %s206 = sphi 0, %s205
      %s220 = sphi 0, %s206
      %s224 = sphi 0, %s224
      %s226 = sphi 0, %s224
      %s227 = sphi 0, %s226
      %s241 = sphi 0, %s227
      %s245 = sphi 0, %s245
      %s247 = sphi 0, %s245
      %s248 = sphi 0, %s247
      %s262 = sphi 0, %s248
      %s268 = sphi 0, %s270
      %s271 = sphi 0, %s268
      %s272 = sphi 0, %s271
      %s288 = sphi 0, %s272
    $region4: #{tpu_custom_call.1} parent=1 // loop_header_branch
      %25 = sbr.rel (%p23) target = $region8
    $region5: #{tpu_custom_call.1} parent=1 // loop_body
      %s27 = ssub.s32 %s22, 1
      %s28 = ssub.s32 %s22, 2
      %s29 = sadd.s32 %s22, 1
      %s30 = ssub.s32 %s22, %s29
      %p31 = scmp.eq.s32.totalorder %s30, 0
      %s33 = sadd.s32 %s32, 1
      %s34 = scalar_select %p31, %s32, %s33
      %p37 = pneg %p31
      %p38 = scmp.eq.s32.totalorder %s22, 1
      %p39 = por %p37, %p38
      %p40 = scmp.ne.s32.totalorder %s32, %s35
      %p41 = scmp.eq.s32.totalorder %s22, 0
      %p42 = por %p40, %p41
      %p43 = scmp.ne.s32.totalorder %s32, %s35
      %p44 = scmp.eq.s32.totalorder %s27, 1
      %p45 = por %p43, %p44
      %p46 = scmp.ne.s32.totalorder %s35, %s36
      %p47 = scmp.eq.s32.totalorder %s27, 0
      %p48 = por %p46, %p47
      %p49 = scmp.ne.s32.totalorder %s35, %s36
      %p50 = scmp.eq.s32.totalorder %s28, 1
      %p51 = por %p49, %p50
      %p53 = scmp.ne.s32.totalorder %s36, %s52
      %p54 = scmp.eq.s32.totalorder %s28, 0
      %p55 = por %p53, %p54
      %s57 = sadd.s32 %s56, 1
      %p60 = scmp.eq.s32.totalorder %s22, 1
      %p61 = scmp.ne.s32.totalorder %s56, %s58
      %p62 = scmp.eq.s32.totalorder %s22, 0
      %p63 = por %p61, %p62
      %p64 = scmp.ne.s32.totalorder %s56, %s58
      %p65 = scmp.eq.s32.totalorder %s27, 1
      %p66 = por %p64, %p65
      %p67 = scmp.ne.s32.totalorder %s58, %s59
      %p68 = scmp.eq.s32.totalorder %s27, 0
      %p69 = por %p67, %p68
      %p70 = scmp.ne.s32.totalorder %s58, %s59
      %p71 = scmp.eq.s32.totalorder %s28, 1
      %p72 = por %p70, %p71
      %p74 = scmp.ne.s32.totalorder %s59, %s73
      %p75 = scmp.eq.s32.totalorder %s28, 0
      %p76 = por %p74, %p75
      %s78 = sadd.s32 %s77, 1
      %p81 = scmp.eq.s32.totalorder %s22, 1
      %p82 = scmp.ne.s32.totalorder %s77, %s79
      %p83 = scmp.eq.s32.totalorder %s22, 0
      %p84 = por %p82, %p83
      %p85 = scmp.ne.s32.totalorder %s77, %s79
      %p86 = scmp.eq.s32.totalorder %s27, 1
      %p87 = por %p85, %p86
      %p88 = scmp.ne.s32.totalorder %s79, %s80
      %p89 = scmp.eq.s32.totalorder %s27, 0
      %p90 = por %p88, %p89
      %p91 = scmp.ne.s32.totalorder %s79, %s80
      %p92 = scmp.eq.s32.totalorder %s28, 1
      %p93 = por %p91, %p92
      %p95 = scmp.ne.s32.totalorder %s80, %s94
      %p96 = scmp.eq.s32.totalorder %s28, 0
      %p97 = por %p95, %p96
      %s99 = sadd.s32 %s98, 1
      %p102 = scmp.eq.s32.totalorder %s22, 1
      %p103 = scmp.ne.s32.totalorder %s98, %s100
      %p104 = scmp.eq.s32.totalorder %s22, 0
      %p105 = por %p103, %p104
      %p106 = scmp.ne.s32.totalorder %s98, %s100
      %p107 = scmp.eq.s32.totalorder %s27, 1
      %p108 = por %p106, %p107
      %p109 = scmp.ne.s32.totalorder %s100, %s101
      %p110 = scmp.eq.s32.totalorder %s27, 0
      %p111 = por %p109, %p110
      %p112 = scmp.ne.s32.totalorder %s100, %s101
      %p113 = scmp.eq.s32.totalorder %s28, 1
      %p114 = por %p112, %p113
      %p116 = scmp.ne.s32.totalorder %s101, %s115
      %p117 = scmp.eq.s32.totalorder %s28, 0
      %p118 = por %p116, %p117
      %s120 = sadd.s32 %s119, 1
      %p123 = scmp.eq.s32.totalorder %s22, 1
      %p124 = scmp.ne.s32.totalorder %s119, %s121
      %p125 = scmp.eq.s32.totalorder %s22, 0
      %p126 = por %p124, %p125
      %p127 = scmp.ne.s32.totalorder %s119, %s121
      %p128 = scmp.eq.s32.totalorder %s27, 1
      %p129 = por %p127, %p128
      %p130 = scmp.ne.s32.totalorder %s121, %s122
      %p131 = scmp.eq.s32.totalorder %s27, 0
      %p132 = por %p130, %p131
      %p133 = scmp.ne.s32.totalorder %s121, %s122
      %p134 = scmp.eq.s32.totalorder %s28, 1
      %p135 = por %p133, %p134
      %p137 = scmp.ne.s32.totalorder %s122, %s136
      %p138 = scmp.eq.s32.totalorder %s28, 0
      %p139 = por %p137, %p138
      %s141 = sadd.s32 %s140, 1
      %p144 = scmp.eq.s32.totalorder %s22, 1
      %p145 = scmp.ne.s32.totalorder %s140, %s142
      %p146 = scmp.eq.s32.totalorder %s22, 0
      %p147 = por %p145, %p146
      %p148 = scmp.ne.s32.totalorder %s140, %s142
      %p149 = scmp.eq.s32.totalorder %s27, 1
      %p150 = por %p148, %p149
      %p151 = scmp.ne.s32.totalorder %s142, %s143
      %p152 = scmp.eq.s32.totalorder %s27, 0
      %p153 = por %p151, %p152
      %p154 = scmp.ne.s32.totalorder %s142, %s143
      %p155 = scmp.eq.s32.totalorder %s28, 1
      %p156 = por %p154, %p155
      %p158 = scmp.ne.s32.totalorder %s143, %s157
      %p159 = scmp.eq.s32.totalorder %s28, 0
      %p160 = por %p158, %p159
      %s162 = sadd.s32 %s161, 1
      %p165 = scmp.eq.s32.totalorder %s22, 1
      %p166 = scmp.ne.s32.totalorder %s161, %s163
      %p167 = scmp.eq.s32.totalorder %s22, 0
      %p168 = por %p166, %p167
      %p169 = scmp.ne.s32.totalorder %s161, %s163
      %p170 = scmp.eq.s32.totalorder %s27, 1
      %p171 = por %p169, %p170
      %p172 = scmp.ne.s32.totalorder %s163, %s164
      %p173 = scmp.eq.s32.totalorder %s27, 0
      %p174 = por %p172, %p173
      %p175 = scmp.ne.s32.totalorder %s163, %s164
      %p176 = scmp.eq.s32.totalorder %s28, 1
      %p177 = por %p175, %p176
      %p179 = scmp.ne.s32.totalorder %s164, %s178
      %p180 = scmp.eq.s32.totalorder %s28, 0
      %p181 = por %p179, %p180
      %s183 = sadd.s32 %s182, 1
      %p186 = scmp.eq.s32.totalorder %s22, 1
      %p187 = scmp.ne.s32.totalorder %s182, %s184
      %p188 = scmp.eq.s32.totalorder %s22, 0
      %p189 = por %p187, %p188
      %p190 = scmp.ne.s32.totalorder %s182, %s184
      %p191 = scmp.eq.s32.totalorder %s27, 1
      %p192 = por %p190, %p191
      %p193 = scmp.ne.s32.totalorder %s184, %s185
      %p194 = scmp.eq.s32.totalorder %s27, 0
      %p195 = por %p193, %p194
      %p196 = scmp.ne.s32.totalorder %s184, %s185
      %p197 = scmp.eq.s32.totalorder %s28, 1
      %p198 = por %p196, %p197
      %p200 = scmp.ne.s32.totalorder %s185, %s199
      %p201 = scmp.eq.s32.totalorder %s28, 0
      %p202 = por %p200, %p201
      %s204 = sadd.s32 %s203, 1
      %p207 = scmp.eq.s32.totalorder %s22, 1
      %p208 = scmp.ne.s32.totalorder %s203, %s205
      %p209 = scmp.eq.s32.totalorder %s22, 0
      %p210 = por %p208, %p209
      %p211 = scmp.ne.s32.totalorder %s203, %s205
      %p212 = scmp.eq.s32.totalorder %s27, 1
      %p213 = por %p211, %p212
      %p214 = scmp.ne.s32.totalorder %s205, %s206
      %p215 = scmp.eq.s32.totalorder %s27, 0
      %p216 = por %p214, %p215
      %p217 = scmp.ne.s32.totalorder %s205, %s206
      %p218 = scmp.eq.s32.totalorder %s28, 1
      %p219 = por %p217, %p218
      %p221 = scmp.ne.s32.totalorder %s206, %s220
      %p222 = scmp.eq.s32.totalorder %s28, 0
      %p223 = por %p221, %p222
      %s225 = sadd.s32 %s224, 1
      %p228 = scmp.eq.s32.totalorder %s22, 1
      %p229 = scmp.ne.s32.totalorder %s224, %s226
      %p230 = scmp.eq.s32.totalorder %s22, 0
      %p231 = por %p229, %p230
      %p232 = scmp.ne.s32.totalorder %s224, %s226
      %p233 = scmp.eq.s32.totalorder %s27, 1
      %p234 = por %p232, %p233
      %p235 = scmp.ne.s32.totalorder %s226, %s227
      %p236 = scmp.eq.s32.totalorder %s27, 0
      %p237 = por %p235, %p236
      %p238 = scmp.ne.s32.totalorder %s226, %s227
      %p239 = scmp.eq.s32.totalorder %s28, 1
      %p240 = por %p238, %p239
      %p242 = scmp.ne.s32.totalorder %s227, %s241
      %p243 = scmp.eq.s32.totalorder %s28, 0
      %p244 = por %p242, %p243
      %s246 = sadd.s32 %s245, 1
      %p249 = scmp.eq.s32.totalorder %s22, 1
      %p250 = scmp.ne.s32.totalorder %s245, %s247
      %p251 = scmp.eq.s32.totalorder %s22, 0
      %p252 = por %p250, %p251
      %p253 = scmp.ne.s32.totalorder %s245, %s247
      %p254 = scmp.eq.s32.totalorder %s27, 1
      %p255 = por %p253, %p254
      %p256 = scmp.ne.s32.totalorder %s247, %s248
      %p257 = scmp.eq.s32.totalorder %s27, 0
      %p258 = por %p256, %p257
      %p259 = scmp.ne.s32.totalorder %s247, %s248
      %p260 = scmp.eq.s32.totalorder %s28, 1
      %p261 = por %p259, %p260
      %p263 = scmp.ne.s32.totalorder %s248, %s262
      %p264 = scmp.eq.s32.totalorder %s28, 0
      %p265 = por %p263, %p264
      %s266 = ssub.s32 %s22, %s29
      %p267 = scmp.eq.s32.totalorder %s266, 0
      %s269 = sadd.s32 %s268, 1
      %s270 = scalar_select %p267, %s268, %s269
      %p273 = pneg %p267
      %p274 = scmp.eq.s32.totalorder %s22, 1
      %p275 = por %p273, %p274
      %p276 = scmp.ne.s32.totalorder %s268, %s271
      %p277 = scmp.eq.s32.totalorder %s22, 0
      %p278 = por %p276, %p277
      %p279 = scmp.ne.s32.totalorder %s268, %s271
      %p280 = scmp.eq.s32.totalorder %s27, 1
      %p281 = por %p279, %p280
      %p282 = scmp.ne.s32.totalorder %s271, %s272
      %p283 = scmp.eq.s32.totalorder %s27, 0
      %p284 = por %p282, %p283
      %p285 = scmp.ne.s32.totalorder %s271, %s272
      %p286 = scmp.eq.s32.totalorder %s28, 1
      %p287 = por %p285, %p286
      %p289 = scmp.ne.s32.totalorder %s272, %s288
      %p290 = scmp.eq.s32.totalorder %s28, 0
      %p291 = por %p289, %p290
      %p292 = scmp.le.s32.totalorder 1, %s22
      %p293 = scmp.lt.s32.totalorder %s22, 3
      %p294 = pnand %p292, %p293
      %p295 = pneg %p294
      // Predicated region
      $region9: #{tpu_custom_call.1} parent=5 // pred_check
        _
      $region10: #{tpu_custom_call.1} parent=5 // pred_check_branch
        %297 = sbr.rel (%p294) target = $region12
      $region11: #{tpu_custom_call.1} parent=5 // pred_region
        %s298 = ssub.s32 %s22, 1
        // Predicated region
        $region13: #{tpu_custom_call.1} parent=11 // pred_check
          %p299 = pneg %p69
        $region14: #{tpu_custom_call.1} parent=11 // pred_check_branch
          %301 = sbr.rel (%p299) target = $region16
        $region15: #{tpu_custom_call.1} parent=11 // pred_region
          _
        $region16: #{tpu_custom_call.1} parent=11 // pred_fallthru
          _
        // Predicated region
        $region17: #{tpu_custom_call.1} parent=11 // pred_check
          %p302 = pneg %p90
        $region18: #{tpu_custom_call.1} parent=11 // pred_check_branch
          %304 = sbr.rel (%p302) target = $region20
        $region19: #{tpu_custom_call.1} parent=11 // pred_region
          _
        $region20: #{tpu_custom_call.1} parent=11 // pred_fallthru
          _
        // Predicated region
        $region21: #{tpu_custom_call.1} parent=11 // pred_check
          %p305 = pneg %p111
        $region22: #{tpu_custom_call.1} parent=11 // pred_check_branch
          %307 = sbr.rel (%p305) target = $region24
        $region23: #{tpu_custom_call.1} parent=11 // pred_region
          _
        $region24: #{tpu_custom_call.1} parent=11 // pred_fallthru
          _
        // Predicated region
        $region25: #{tpu_custom_call.1} parent=11 // pred_check
          %p308 = pneg %p132
        $region26: #{tpu_custom_call.1} parent=11 // pred_check_branch
          %310 = sbr.rel (%p308) target = $region28
        $region27: #{tpu_custom_call.1} parent=11 // pred_region
          _
        $region28: #{tpu_custom_call.1} parent=11 // pred_fallthru
          _
        // Predicated region
        $region29: #{tpu_custom_call.1} parent=11 // pred_check
          %p311 = pneg %p153
        $region30: #{tpu_custom_call.1} parent=11 // pred_check_branch
          %313 = sbr.rel (%p311) target = $region32
        $region31: #{tpu_custom_call.1} parent=11 // pred_region
          _
        $region32: #{tpu_custom_call.1} parent=11 // pred_fallthru
          _
        // Predicated region
        $region33: #{tpu_custom_call.1} parent=11 // pred_check
          %p314 = pneg %p174
        $region34: #{tpu_custom_call.1} parent=11 // pred_check_branch
          %316 = sbr.rel (%p314) target = $region36
        $region35: #{tpu_custom_call.1} parent=11 // pred_region
          _
        $region36: #{tpu_custom_call.1} parent=11 // pred_fallthru
          _
        // Predicated region
        $region37: #{tpu_custom_call.1} parent=11 // pred_check
          %p317 = pneg %p195
        $region38: #{tpu_custom_call.1} parent=11 // pred_check_branch
          %319 = sbr.rel (%p317) target = $region40
        $region39: #{tpu_custom_call.1} parent=11 // pred_region
          %s321 = ssub.s32 2048, 2048
          %322 = vsyncadd [#allocation3], %s321
          %s323 = sshll.u32 [#allocation2], 4
          %s324 = int_to_ptr.vmem [resolvable:$true] %s323
          %329 = dma.hbm_to_vmem [thread:$0]  %s7, 2048, %s324, [#allocation3], 128, 128, 8
        $region40: #{tpu_custom_call.1} parent=11 // pred_fallthru
          _
        // Predicated region
        $region41: #{tpu_custom_call.1} parent=11 // pred_check
          %p330 = pneg %p216
        $region42: #{tpu_custom_call.1} parent=11 // pred_check_branch
          %332 = sbr.rel (%p330) target = $region44
        $region43: #{tpu_custom_call.1} parent=11 // pred_region
          _
        $region44: #{tpu_custom_call.1} parent=11 // pred_fallthru
          _
        // Predicated region
        $region45: #{tpu_custom_call.1} parent=11 // pred_check
          %p333 = pneg %p237
        $region46: #{tpu_custom_call.1} parent=11 // pred_check_branch
          %335 = sbr.rel (%p333) target = $region48
        $region47: #{tpu_custom_call.1} parent=11 // pred_region
          %s337 = ssub.s32 2048, 2048
          %338 = vsyncadd [#allocation6], %s337
          %s339 = sshll.u32 [#allocation5], 4
          %s340 = int_to_ptr.vmem [resolvable:$true] %s339
          %345 = dma.hbm_to_vmem [thread:$0]  %s9, 2048, %s340, [#allocation6], 128, 128, 8
        $region48: #{tpu_custom_call.1} parent=11 // pred_fallthru
          _
        // Predicated region
        $region49: #{tpu_custom_call.1} parent=11 // pred_check
          %p346 = pneg %p258
        $region50: #{tpu_custom_call.1} parent=11 // pred_check_branch
          %348 = sbr.rel (%p346) target = $region52
        $region51: #{tpu_custom_call.1} parent=11 // pred_region
          _
        $region52: #{tpu_custom_call.1} parent=11 // pred_fallthru
          _
      $region12: #{tpu_custom_call.1} parent=5 // pred_fallthru
        _
      %p349 = scmp.lt.s32.totalorder %s22, 2
      // Predicated region
      $region53: #{tpu_custom_call.1} parent=5 // pred_check
        %p350 = pneg %p349
      $region54: #{tpu_custom_call.1} parent=5 // pred_check_branch
        %352 = sbr.rel (%p350) target = $region56
      $region55: #{tpu_custom_call.1} parent=5 // pred_region
        // Predicated region
        $region57: #{tpu_custom_call.1} parent=55 // pred_check
          %p353 = pneg %p42
        $region58: #{tpu_custom_call.1} parent=55 // pred_check_branch
          %355 = sbr.rel (%p353) target = $region60
        $region59: #{tpu_custom_call.1} parent=55 // pred_region
          %s356 = smul.u32 4, %s22
          %p357 = scmp.lt.s32.totalorder %s356, 7
          %s358 = scalar_select %p357, %s356, 7
          %s359 = smul.addr %s358, 8
          %s360 = scalar_lea.vmem %s0, %s359
          %s361 = smul.u32 4, %s22
        $region60: #{tpu_custom_call.1} parent=55 // pred_fallthru
          _
      $region56: #{tpu_custom_call.1} parent=5 // pred_fallthru
        _
      %p362 = scmp.le.s32.totalorder 1, %s22
      %p363 = scmp.lt.s32.totalorder %s22, 3
      %p364 = pnand %p362, %p363
      %p365 = pneg %p364
      // Predicated region
      $region61: #{tpu_custom_call.1} parent=5 // pred_check
        _
      $region62: #{tpu_custom_call.1} parent=5 // pred_check_branch
        %367 = sbr.rel (%p364) target = $region64
      $region63: #{tpu_custom_call.1} parent=5 // pred_region
        %s368 = ssub.s32 %s22, 1
        // Predicated region
        $region65: #{tpu_custom_call.1} parent=63 // pred_check
          %p369 = pneg %p195
        $region66: #{tpu_custom_call.1} parent=63 // pred_check_branch
          %371 = sbr.rel (%p369) target = $region68
        $region67: #{tpu_custom_call.1} parent=63 // pred_region
          %372 = dma.done [#allocation3], 2048
        $region68: #{tpu_custom_call.1} parent=63 // pred_fallthru
          _
        // Predicated region
        $region69: #{tpu_custom_call.1} parent=63 // pred_check
          %p373 = pneg %p237
        $region70: #{tpu_custom_call.1} parent=63 // pred_check_branch
          %375 = sbr.rel (%p373) target = $region72
        $region71: #{tpu_custom_call.1} parent=63 // pred_region
          %376 = dma.done [#allocation6], 2048
        $region72: #{tpu_custom_call.1} parent=63 // pred_fallthru
          _
        %s377 = smul.u32 4, %s27
        %p378 = scmp.lt.s32.totalorder %s377, 7
        %s379 = scalar_select %p378, %s377, 7
        %s380 = smul.addr %s379, 8
        %s381 = scalar_lea.vmem %s0, %s380
        %p382 = pneg %p48
        %p383 = pneg %p45
        %p384 = pneg %p69
        %p385 = pneg %p66
        %p386 = pneg %p90
        %p387 = pneg %p87
        %p388 = pneg %p111
        %p389 = pneg %p108
        %p390 = pneg %p132
        %p391 = pneg %p129
        %p392 = pneg %p153
        %p393 = pneg %p150
        %p394 = pneg %p174
        %p395 = pneg %p171
        %p396 = pneg %p195
        %p397 = pneg %p192
        %p398 = pneg %p216
        %p399 = pneg %p213
        %p400 = pneg %p237
        %p401 = pneg %p234
        %p402 = pneg %p258
        %p403 = pneg %p255
        %p404 = pneg %p284
        %p405 = pneg %p281
        %s406 = sand.u32 %s271, 1
        %s407 = scalar_lea.sflag [#allocation4], %s406
        %s408 = sand.u32 %s271, 1
        %s409 = smul.addr %s408, 32
        %s410 = scalar_lea.vmem [#allocation7], %s409
        %s411 = smul.u32 4, %s27
        %p412 = scmp.lt.s32.totalorder %s411, 7
        %s413 = scalar_select %p412, %s411, 7
        %s414 = smul.addr %s413, 8
        %s415 = scalar_lea.vmem %s0, %s414
        %s416 = smul.u32 4, %s27
        %s417 = smul.u32 4, %s27
        %v418 = vld [vmem:[%s415] sm:$0xff]
        %v419 = vld [vmem:[%s415 + $0x8] sm:$0xff]
        %v420 = vld [vmem:[%s415 + $0x10] sm:$0xff]
        %v421 = vld [vmem:[%s415 + $0x18] sm:$0xff]
        %v422 = vld [vmem:[%s3] sm:$0x1]
        %v423 = vld [vmem:[%s4] sm:$0x1]
        %424 = vadd.xlane.f32.xlu0 %v418
        %v425 = vpop.xlane.xlu0 %424
        %426 = vadd.xlane.f32.xlu0 %v419
        %v427 = vpop.xlane.xlu0 %426
        %428 = vadd.xlane.f32.xlu0 %v420
        %v429 = vpop.xlane.xlu0 %428
        %430 = vadd.xlane.f32.xlu0 %v421
        %v431 = vpop.xlane.xlu0 %430
        %v432 = vrcp.pop 128.0
        %v433 = vmul.f32 %v425, %v432
        %v434 = vmul.f32 %v427, %v432
        %v435 = vmul.f32 %v429, %v432
        %v436 = vmul.f32 %v431, %v432
        %v437 = vmul.f32 %v418, %v418
        %v438 = vmul.f32 %v419, %v419
        %v439 = vmul.f32 %v420, %v420
        %v440 = vmul.f32 %v421, %v421
        %441 = vadd.xlane.f32.xlu0 %v437
        %v442 = vpop.xlane.xlu0 %441
        %443 = vadd.xlane.f32.xlu0 %v438
        %v444 = vpop.xlane.xlu0 %443
        %445 = vadd.xlane.f32.xlu0 %v439
        %v446 = vpop.xlane.xlu0 %445
        %447 = vadd.xlane.f32.xlu0 %v440
        %v448 = vpop.xlane.xlu0 %447
        %v449 = vmul.f32 %v442, %v432
        %v450 = vmul.f32 %v444, %v432
        %v451 = vmul.f32 %v446, %v432
        %v452 = vmul.f32 %v448, %v432
        %v453 = vmul.f32 %v433, %v433
        %v454 = vmul.f32 %v434, %v434
        %v455 = vmul.f32 %v435, %v435
        %v456 = vmul.f32 %v436, %v436
        %v457 = vsub.f32 %v449, %v453
        %v458 = vsub.f32 %v450, %v454
        %v459 = vsub.f32 %v451, %v455
        %v460 = vsub.f32 %v452, %v456
        %v461 = vsub.f32 %v418, %v433
        %v462 = vsub.f32 %v419, %v434
        %v463 = vsub.f32 %v420, %v435
        %v464 = vsub.f32 %v421, %v436
        %v465 = vadd.f32 %v457, 1e-05
        %v466 = vadd.f32 %v458, 1e-05
        %v467 = vadd.f32 %v459, 1e-05
        %v468 = vadd.f32 %v460, 1e-05
        %v469 = vrsqrt.pop %v465
        %v470 = vrsqrt.pop %v466
        %v471 = vrsqrt.pop %v467
        %v472 = vrsqrt.pop %v468
        %v473 = vmul.f32 %v461, %v469
        %v474 = vmul.f32 %v462, %v470
        %v475 = vmul.f32 %v463, %v471
        %v476 = vmul.f32 %v464, %v472
        %v478 = vlaneseq
        %v479 = vshrl.u32 %v478, 7
        %v480 = vsub.s32 0, %v479
        %v481 = vrot.slane %v422, %v480
        %v483 = vmul.f32 %v473, %v481
        %v484 = vmul.f32 %v474, %v481
        %v485 = vmul.f32 %v475, %v481
        %v486 = vmul.f32 %v476, %v481
        %v488 = vlaneseq
        %v489 = vshrl.u32 %v488, 7
        %v490 = vsub.s32 0, %v489
        %v491 = vrot.slane %v423, %v490
        %v493 = vadd.f32 %v483, %v491
        %v494 = vadd.f32 %v484, %v491
        %v495 = vadd.f32 %v485, %v491
        %v496 = vadd.f32 %v486, %v491
        %v497 = vld [vmem:[%s1] sm:$0xff]
        %v498 = vld [vmem:[%s1 + $0x8] sm:$0xff]
        %v499 = vld [vmem:[%s1 + $0x10] sm:$0xff]
        %v500 = vld [vmem:[%s1 + $0x18] sm:$0xff]
        %v501 = vld [vmem:[%s1 + $0x20] sm:$0xff]
        %v502 = vld [vmem:[%s1 + $0x28] sm:$0xff]
        %v503 = vld [vmem:[%s1 + $0x30] sm:$0xff]
        %v504 = vld [vmem:[%s1 + $0x38] sm:$0xff]
        %v505 = vld [vmem:[%s2] sm:$0x1]
        %v506 = vld [vmem:[%s2 + $0x1] sm:$0x1]
        %v507 = vld [vmem:[%s2 + $0x2] sm:$0x1]
        %v508 = vld [vmem:[%s2 + $0x3] sm:$0x1]
        %v509 = vld [vmem:[%s2 + $0x4] sm:$0x1]
        %v510 = vld [vmem:[%s2 + $0x5] sm:$0x1]
        %v511 = vld [vmem:[%s2 + $0x6] sm:$0x1]
        %v512 = vld [vmem:[%s2 + $0x7] sm:$0x1]
        %vm513 = vcmask 64512
        %v515 = vsel %vm513, %v497, 0
        %v518 = vsel %vm513, %v498, 0
        %v521 = vsel %vm513, %v499, 0
        %v524 = vsel %vm513, %v500, 0
        %v527 = vsel %vm513, %v501, 0
        %v530 = vsel %vm513, %v502, 0
        %v533 = vsel %vm513, %v503, 0
        %v536 = vsel %vm513, %v504, 0
        %538 = vmatprep.subr.mxu0 0.0
        %539 = vmatpush1.msra.mxu0 %v493
        %540 = vmatprep.subr.mxu0 0.0
        %541 = vmatpush1.msra.mxu0 0.0
        %542 = vmatprep.subr.mxu0 0.0
        %543 = vmatpush1.msra.mxu0 0.0
        %544 = vmatprep.subr.mxu0 0.0
        %545 = vmatpush1.msra.mxu0 0.0
        %546 = vmatprep.subr.mxu0 0.0
        %547 = vmatpush1.msra.mxu0 0.0
        %548 = vmatprep.subr.mxu0 0.0
        %549 = vmatpush1.msra.mxu0 0.0
        %550 = vmatprep.subr.mxu0 0.0
        %551 = vmatpush1.msra.mxu0 0.0
        %552 = vmatprep.subr.mxu0 0.0
        %553 = vmatpush1.msra.mxu0 0.0
        %554 = vmatprep.subr.mxu0 0.0
        %555 = vmatpush1.msra.mxu0 0.0
        %556 = vmatprep.subr.mxu0 0.0
        %557 = vmatpush1.msra.mxu0 0.0
        %558 = vmatprep.subr.mxu0 0.0
        %559 = vmatpush1.msra.mxu0 0.0
        %560 = vmatprep.subr.mxu0 0.0
        %561 = vmatpush1.msra.mxu0 0.0
        %562 = vmatprep.subr.mxu0 0.0
        %563 = vmatpush1.msra.mxu0 0.0
        %564 = vmatprep.subr.mxu0 0.0
        %565 = vmatpush1.msra.mxu0 0.0
        %566 = vmatprep.subr.mxu0 0.0
        %567 = vmatpush1.msra.mxu0 0.0
        %568 = vmatprep.subr.mxu0 0.0
        %569 = vmatpush1.msra.mxu0 0.0
        %570 = vmatprep.subr.mxu0 0.0
        %571 = vmatpush1.msra.mxu0 0.0
        %572 = vmatprep.subr.mxu0 0.0
        %573 = vmatpush1.msra.mxu0 0.0
        %574 = vmatprep.subr.mxu0 0.0
        %575 = vmatpush1.msra.mxu0 0.0
        %576 = vmatprep.subr.mxu0 0.0
        %577 = vmatpush1.msra.mxu0 0.0
        %578 = vmatprep.subr.mxu0 0.0
        %579 = vmatpush1.msra.mxu0 0.0
        %580 = vmatprep.subr.mxu0 0.0
        %581 = vmatpush1.msra.mxu0 0.0
        %582 = vmatprep.subr.mxu0 0.0
        %583 = vmatpush1.msra.mxu0 0.0
        %584 = vmatprep.subr.mxu0 0.0
        %585 = vmatpush1.msra.mxu0 0.0
        %586 = vmatprep.subr.mxu0 0.0
        %587 = vmatpush1.msra.mxu0 0.0
        %588 = vmatprep.subr.mxu0 0.0
        %589 = vmatpush1.msra.mxu0 0.0
        %590 = vmatprep.subr.mxu0 0.0
        %591 = vmatpush1.msra.mxu0 0.0
        %592 = vmatprep.subr.mxu0 0.0
        %593 = vmatpush1.msra.mxu0 0.0
        %594 = vmatprep.subr.mxu0 0.0
        %595 = vmatpush1.msra.mxu0 0.0
        %596 = vmatprep.subr.mxu0 0.0
        %597 = vmatpush1.msra.mxu0 0.0
        %598 = vmatprep.subr.mxu0 0.0
        %599 = vmatpush1.msra.mxu0 0.0
        %600 = vmatprep.subr.mxu0 0.0
        %601 = vmatpush1.msra.mxu0 0.0
        %602 = vmatprep.mubr.f32.mxu0 0.0
        %603 = vmatmul.mubr.f32.gmra.mrb[0].mxu0 %v515
        %v604 = vpop.f32.mrb[0].mxu0
        %v605 = vadd.f32 0.0, %v604
        %v606 = vpop.f32.mrb[0].mxu0
        %607 = vmatprep.mubr.f32.mxu0 0.0
        %608 = vmatmul.mubr.f32.gmra.mrb[0].mxu0 %v518
        %v609 = vpop.f32.mrb[0].mxu0
        %v610 = vadd.f32 0.0, %v609
        %v611 = vpop.f32.mrb[0].mxu0
        %612 = vmatprep.mubr.f32.mxu0 0.0
        %613 = vmatmul.mubr.f32.gmra.mrb[0].mxu0 %v521
        %v614 = vpop.f32.mrb[0].mxu0
        %v615 = vadd.f32 0.0, %v614
        %v616 = vpop.f32.mrb[0].mxu0
        %617 = vmatprep.mubr.f32.mxu0 0.0
        %618 = vmatmul.mubr.f32.gmra.mrb[0].mxu0 %v524
        %v619 = vpop.f32.mrb[0].mxu0
        %v620 = vadd.f32 0.0, %v619
        %v621 = vpop.f32.mrb[0].mxu0
        %622 = vmatprep.mubr.f32.mxu0 0.0
        %623 = vmatmul.mubr.f32.gmra.mrb[0].mxu0 %v527
        %v624 = vpop.f32.mrb[0].mxu0
        %v625 = vadd.f32 0.0, %v624
        %v626 = vpop.f32.mrb[0].mxu0
        %627 = vmatprep.mubr.f32.mxu0 0.0
        %628 = vmatmul.mubr.f32.gmra.mrb[0].mxu0 %v530
        %v629 = vpop.f32.mrb[0].mxu0
        %v630 = vadd.f32 0.0, %v629
        %v631 = vpop.f32.mrb[0].mxu0
        %632 = vmatprep.mubr.f32.mxu0 0.0
        %633 = vmatmul.mubr.f32.gmra.mrb[0].mxu0 %v533
        %v634 = vpop.f32.mrb[0].mxu0
        %v635 = vadd.f32 0.0, %v634
        %v636 = vpop.f32.mrb[0].mxu0
        %637 = vmatprep.mubr.f32.mxu0 0.0
        %638 = vmatmul.mubr.f32.gmra.mrb[0].mxu0 %v536
        %v639 = vpop.f32.mrb[0].mxu0
        %v640 = vadd.f32 0.0, %v639
        %v641 = vpop.f32.mrb[0].mxu0
        %642 = vdwg.mxu0
        %v651 = vlaneseq
        %v652 = vshrl.u32 %v651, 7
        %v653 = vsub.s32 0, %v652
        %v654 = vrot.slane %v505, %v653
        %v655 = vlaneseq
        %v656 = vshrl.u32 %v655, 7
        %v657 = vsub.s32 0, %v656
        %v658 = vrot.slane %v506, %v657
        %v659 = vlaneseq
        %v660 = vshrl.u32 %v659, 7
        %v661 = vsub.s32 0, %v660
        %v662 = vrot.slane %v507, %v661
        %v663 = vlaneseq
        %v664 = vshrl.u32 %v663, 7
        %v665 = vsub.s32 0, %v664
        %v666 = vrot.slane %v508, %v665
        %v667 = vlaneseq
        %v668 = vshrl.u32 %v667, 7
        %v669 = vsub.s32 0, %v668
        %v670 = vrot.slane %v509, %v669
        %v671 = vlaneseq
        %v672 = vshrl.u32 %v671, 7
        %v673 = vsub.s32 0, %v672
        %v674 = vrot.slane %v510, %v673
        %v675 = vlaneseq
        %v676 = vshrl.u32 %v675, 7
        %v677 = vsub.s32 0, %v676
        %v678 = vrot.slane %v511, %v677
        %v679 = vlaneseq
        %v680 = vshrl.u32 %v679, 7
        %v681 = vsub.s32 0, %v680
        %v682 = vrot.slane %v512, %v681
        %v691 = vmul.f32 %v654, %v605
        %v692 = vmul.f32 %v658, %v610
        %v693 = vmul.f32 %v662, %v615
        %v694 = vmul.f32 %v666, %v620
        %v695 = vmul.f32 %v670, %v625
        %v696 = vmul.f32 %v674, %v630
        %v697 = vmul.f32 %v678, %v635
        %v698 = vmul.f32 %v682, %v640
        %v699 = vadd.f32 %v691, %v692
        %v700 = vadd.f32 %v699, %v693
        %v701 = vadd.f32 %v700, %v694
        %v702 = vadd.f32 %v701, %v695
        %v703 = vadd.f32 %v702, %v696
        %v704 = vadd.f32 %v703, %v697
        %v705 = vadd.f32 %v704, %v698
        %706 = vmatprep.subr.mxu0 0.0
        %707 = vmatpush1.msra.mxu0 %v494
        %708 = vmatprep.subr.mxu0 0.0
        %709 = vmatpush1.msra.mxu0 0.0
        %710 = vmatprep.subr.mxu0 0.0
        %711 = vmatpush1.msra.mxu0 0.0
        %712 = vmatprep.subr.mxu0 0.0
        %713 = vmatpush1.msra.mxu0 0.0
        %714 = vmatprep.subr.mxu0 0.0
        %715 = vmatpush1.msra.mxu0 0.0
        %716 = vmatprep.subr.mxu0 0.0
        %717 = vmatpush1.msra.mxu0 0.0
        %718 = vmatprep.subr.mxu0 0.0
        %719 = vmatpush1.msra.mxu0 0.0
        %720 = vmatprep.subr.mxu0 0.0
        %721 = vmatpush1.msra.mxu0 0.0
        %722 = vmatprep.subr.mxu0 0.0
        %723 = vmatpush1.msra.mxu0 0.0
        %724 = vmatprep.subr.mxu0 0.0
        %725 = vmatpush1.msra.mxu0 0.0
        %726 = vmatprep.subr.mxu0 0.0
        %727 = vmatpush1.msra.mxu0 0.0
        %728 = vmatprep.subr.mxu0 0.0
        %729 = vmatpush1.msra.mxu0 0.0
        %730 = vmatprep.subr.mxu0 0.0
        %731 = vmatpush1.msra.mxu0 0.0
        %732 = vmatprep.subr.mxu0 0.0
        %733 = vmatpush1.msra.mxu0 0.0
        %734 = vmatprep.subr.mxu0 0.0
        %735 = vmatpush1.msra.mxu0 0.0
        %736 = vmatprep.subr.mxu0 0.0
        %737 = vmatpush1.msra.mxu0 0.0
        %738 = vmatprep.subr.mxu0 0.0
        %739 = vmatpush1.msra.mxu0 0.0
        %740 = vmatprep.subr.mxu0 0.0
        %741 = vmatpush1.msra.mxu0 0.0
        %742 = vmatprep.subr.mxu0 0.0
        %743 = vmatpush1.msra.mxu0 0.0
        %744 = vmatprep.subr.mxu0 0.0
        %745 = vmatpush1.msra.mxu0 0.0
        %746 = vmatprep.subr.mxu0 0.0
        %747 = vmatpush1.msra.mxu0 0.0
        %748 = vmatprep.subr.mxu0 0.0
        %749 = vmatpush1.msra.mxu0 0.0
        %750 = vmatprep.subr.mxu0 0.0
        %751 = vmatpush1.msra.mxu0 0.0
        %752 = vmatprep.subr.mxu0 0.0
        %753 = vmatpush1.msra.mxu0 0.0
        %754 = vmatprep.subr.mxu0 0.0
        %755 = vmatpush1.msra.mxu0 0.0
        %756 = vmatprep.subr.mxu0 0.0
        %757 = vmatpush1.msra.mxu0 0.0
        %758 = vmatprep.subr.mxu0 0.0
        %759 = vmatpush1.msra.mxu0 0.0
        %760 = vmatprep.subr.mxu0 0.0
        %761 = vmatpush1.msra.mxu0 0.0
        %762 = vmatprep.subr.mxu0 0.0
        %763 = vmatpush1.msra.mxu0 0.0
        %764 = vmatprep.subr.mxu0 0.0
        %765 = vmatpush1.msra.mxu0 0.0
        %766 = vmatprep.subr.mxu0 0.0
        %767 = vmatpush1.msra.mxu0 0.0
        %768 = vmatprep.subr.mxu0 0.0
        %769 = vmatpush1.msra.mxu0 0.0
        %770 = vmatprep.mubr.f32.mxu0 0.0
        %771 = vmatmul.mubr.f32.gmra.mrb[0].mxu0 %v515
        %v772 = vpop.f32.mrb[0].mxu0
        %v773 = vadd.f32 0.0, %v772
        %v774 = vpop.f32.mrb[0].mxu0
        %775 = vmatprep.mubr.f32.mxu0 0.0
        %776 = vmatmul.mubr.f32.gmra.mrb[0].mxu0 %v518
        %v777 = vpop.f32.mrb[0].mxu0
        %v778 = vadd.f32 0.0, %v777
        %v779 = vpop.f32.mrb[0].mxu0
        %780 = vmatprep.mubr.f32.mxu0 0.0
        %781 = vmatmul.mubr.f32.gmra.mrb[0].mxu0 %v521
        %v782 = vpop.f32.mrb[0].mxu0
        %v783 = vadd.f32 0.0, %v782
        %v784 = vpop.f32.mrb[0].mxu0
        %785 = vmatprep.mubr.f32.mxu0 0.0
        %786 = vmatmul.mubr.f32.gmra.mrb[0].mxu0 %v524
        %v787 = vpop.f32.mrb[0].mxu0
        %v788 = vadd.f32 0.0, %v787
        %v789 = vpop.f32.mrb[0].mxu0
        %790 = vmatprep.mubr.f32.mxu0 0.0
        %791 = vmatmul.mubr.f32.gmra.mrb[0].mxu0 %v527
        %v792 = vpop.f32.mrb[0].mxu0
        %v793 = vadd.f32 0.0, %v792
        %v794 = vpop.f32.mrb[0].mxu0
        %795 = vmatprep.mubr.f32.mxu0 0.0
        %796 = vmatmul.mubr.f32.gmra.mrb[0].mxu0 %v530
        %v797 = vpop.f32.mrb[0].mxu0
        %v798 = vadd.f32 0.0, %v797
        %v799 = vpop.f32.mrb[0].mxu0
        %800 = vmatprep.mubr.f32.mxu0 0.0
        %801 = vmatmul.mubr.f32.gmra.mrb[0].mxu0 %v533
        %v802 = vpop.f32.mrb[0].mxu0
        %v803 = vadd.f32 0.0, %v802
        %v804 = vpop.f32.mrb[0].mxu0
        %805 = vmatprep.mubr.f32.mxu0 0.0
        %806 = vmatmul.mubr.f32.gmra.mrb[0].mxu0 %v536
        %v807 = vpop.f32.mrb[0].mxu0
        %v808 = vadd.f32 0.0, %v807
        %v809 = vpop.f32.mrb[0].mxu0
        %810 = vdwg.mxu0
        %v811 = vmul.f32 %v654, %v773
        %v812 = vmul.f32 %v658, %v778
        %v813 = vmul.f32 %v662, %v783
        %v814 = vmul.f32 %v666, %v788
        %v815 = vmul.f32 %v670, %v793
        %v816 = vmul.f32 %v674, %v798
        %v817 = vmul.f32 %v678, %v803
        %v818 = vmul.f32 %v682, %v808
        %v819 = vadd.f32 %v811, %v812
        %v820 = vadd.f32 %v819, %v813
        %v821 = vadd.f32 %v820, %v814
        %v822 = vadd.f32 %v821, %v815
        %v823 = vadd.f32 %v822, %v816
        %v824 = vadd.f32 %v823, %v817
        %v825 = vadd.f32 %v824, %v818
        %826 = vmatprep.subr.mxu0 0.0
        %827 = vmatpush1.msra.mxu0 %v495
        %828 = vmatprep.subr.mxu0 0.0
        %829 = vmatpush1.msra.mxu0 0.0
        %830 = vmatprep.subr.mxu0 0.0
        %831 = vmatpush1.msra.mxu0 0.0
        %832 = vmatprep.subr.mxu0 0.0
        %833 = vmatpush1.msra.mxu0 0.0
        %834 = vmatprep.subr.mxu0 0.0
        %835 = vmatpush1.msra.mxu0 0.0
        %836 = vmatprep.subr.mxu0 0.0
        %837 = vmatpush1.msra.mxu0 0.0
        %838 = vmatprep.subr.mxu0 0.0
        %839 = vmatpush1.msra.mxu0 0.0
        %840 = vmatprep.subr.mxu0 0.0
        %841 = vmatpush1.msra.mxu0 0.0
        %842 = vmatprep.subr.mxu0 0.0
        %843 = vmatpush1.msra.mxu0 0.0
        %844 = vmatprep.subr.mxu0 0.0
        %845 = vmatpush1.msra.mxu0 0.0
        %846 = vmatprep.subr.mxu0 0.0
        %847 = vmatpush1.msra.mxu0 0.0
        %848 = vmatprep.subr.mxu0 0.0
        %849 = vmatpush1.msra.mxu0 0.0
        %850 = vmatprep.subr.mxu0 0.0
        %851 = vmatpush1.msra.mxu0 0.0
        %852 = vmatprep.subr.mxu0 0.0
        %853 = vmatpush1.msra.mxu0 0.0
        %854 = vmatprep.subr.mxu0 0.0
        %855 = vmatpush1.msra.mxu0 0.0
        %856 = vmatprep.subr.mxu0 0.0
        %857 = vmatpush1.msra.mxu0 0.0
        %858 = vmatprep.subr.mxu0 0.0
        %859 = vmatpush1.msra.mxu0 0.0
        %860 = vmatprep.subr.mxu0 0.0
        %861 = vmatpush1.msra.mxu0 0.0
        %862 = vmatprep.subr.mxu0 0.0
        %863 = vmatpush1.msra.mxu0 0.0
        %864 = vmatprep.subr.mxu0 0.0
        %865 = vmatpush1.msra.mxu0 0.0
        %866 = vmatprep.subr.mxu0 0.0
        %867 = vmatpush1.msra.mxu0 0.0
        %868 = vmatprep.subr.mxu0 0.0
        %869 = vmatpush1.msra.mxu0 0.0
        %870 = vmatprep.subr.mxu0 0.0
        %871 = vmatpush1.msra.mxu0 0.0
        %872 = vmatprep.subr.mxu0 0.0
        %873 = vmatpush1.msra.mxu0 0.0
        %874 = vmatprep.subr.mxu0 0.0
        %875 = vmatpush1.msra.mxu0 0.0
        %876 = vmatprep.subr.mxu0 0.0
        %877 = vmatpush1.msra.mxu0 0.0
        %878 = vmatprep.subr.mxu0 0.0
        %879 = vmatpush1.msra.mxu0 0.0
        %880 = vmatprep.subr.mxu0 0.0
        %881 = vmatpush1.msra.mxu0 0.0
        %882 = vmatprep.subr.mxu0 0.0
        %883 = vmatpush1.msra.mxu0 0.0
        %884 = vmatprep.subr.mxu0 0.0
        %885 = vmatpush1.msra.mxu0 0.0
        %886 = vmatprep.subr.mxu0 0.0
        %887 = vmatpush1.msra.mxu0 0.0
        %888 = vmatprep.subr.mxu0 0.0
        %889 = vmatpush1.msra.mxu0 0.0
        %890 = vmatprep.mubr.f32.mxu0 0.0
        %891 = vmatmul.mubr.f32.gmra.mrb[0].mxu0 %v515
        %v892 = vpop.f32.mrb[0].mxu0
        %v893 = vadd.f32 0.0, %v892
        %v894 = vpop.f32.mrb[0].mxu0
        %895 = vmatprep.mubr.f32.mxu0 0.0
        %896 = vmatmul.mubr.f32.gmra.mrb[0].mxu0 %v518
        %v897 = vpop.f32.mrb[0].mxu0
        %v898 = vadd.f32 0.0, %v897
        %v899 = vpop.f32.mrb[0].mxu0
        %900 = vmatprep.mubr.f32.mxu0 0.0
        %901 = vmatmul.mubr.f32.gmra.mrb[0].mxu0 %v521
        %v902 = vpop.f32.mrb[0].mxu0
        %v903 = vadd.f32 0.0, %v902
        %v904 = vpop.f32.mrb[0].mxu0
        %905 = vmatprep.mubr.f32.mxu0 0.0
        %906 = vmatmul.mubr.f32.gmra.mrb[0].mxu0 %v524
        %v907 = vpop.f32.mrb[0].mxu0
        %v908 = vadd.f32 0.0, %v907
        %v909 = vpop.f32.mrb[0].mxu0
        %910 = vmatprep.mubr.f32.mxu0 0.0
        %911 = vmatmul.mubr.f32.gmra.mrb[0].mxu0 %v527
        %v912 = vpop.f32.mrb[0].mxu0
        %v913 = vadd.f32 0.0, %v912
        %v914 = vpop.f32.mrb[0].mxu0
        %915 = vmatprep.mubr.f32.mxu0 0.0
        %916 = vmatmul.mubr.f32.gmra.mrb[0].mxu0 %v530
        %v917 = vpop.f32.mrb[0].mxu0
        %v918 = vadd.f32 0.0, %v917
        %v919 = vpop.f32.mrb[0].mxu0
        %920 = vmatprep.mubr.f32.mxu0 0.0
        %921 = vmatmul.mubr.f32.gmra.mrb[0].mxu0 %v533
        %v922 = vpop.f32.mrb[0].mxu0
        %v923 = vadd.f32 0.0, %v922
        %v924 = vpop.f32.mrb[0].mxu0
        %925 = vmatprep.mubr.f32.mxu0 0.0
        %926 = vmatmul.mubr.f32.gmra.mrb[0].mxu0 %v536
        %v927 = vpop.f32.mrb[0].mxu0
        %v928 = vadd.f32 0.0, %v927
        %v929 = vpop.f32.mrb[0].mxu0
        %930 = vdwg.mxu0
        %v931 = vmul.f32 %v654, %v893
        %v932 = vmul.f32 %v658, %v898
        %v933 = vmul.f32 %v662, %v903
        %v934 = vmul.f32 %v666, %v908
        %v935 = vmul.f32 %v670, %v913
        %v936 = vmul.f32 %v674, %v918
        %v937 = vmul.f32 %v678, %v923
        %v938 = vmul.f32 %v682, %v928
        %v939 = vadd.f32 %v931, %v932
        %v940 = vadd.f32 %v939, %v933
        %v941 = vadd.f32 %v940, %v934
        %v942 = vadd.f32 %v941, %v935
        %v943 = vadd.f32 %v942, %v936
        %v944 = vadd.f32 %v943, %v937
        %v945 = vadd.f32 %v944, %v938
        %946 = vmatprep.subr.mxu0 0.0
        %947 = vmatpush1.msra.mxu0 %v496
        %948 = vmatprep.subr.mxu0 0.0
        %949 = vmatpush1.msra.mxu0 0.0
        %950 = vmatprep.subr.mxu0 0.0
        %951 = vmatpush1.msra.mxu0 0.0
        %952 = vmatprep.subr.mxu0 0.0
        %953 = vmatpush1.msra.mxu0 0.0
        %954 = vmatprep.subr.mxu0 0.0
        %955 = vmatpush1.msra.mxu0 0.0
        %956 = vmatprep.subr.mxu0 0.0
        %957 = vmatpush1.msra.mxu0 0.0
        %958 = vmatprep.subr.mxu0 0.0
        %959 = vmatpush1.msra.mxu0 0.0
        %960 = vmatprep.subr.mxu0 0.0
        %961 = vmatpush1.msra.mxu0 0.0
        %962 = vmatprep.subr.mxu0 0.0
        %963 = vmatpush1.msra.mxu0 0.0
        %964 = vmatprep.subr.mxu0 0.0
        %965 = vmatpush1.msra.mxu0 0.0
        %966 = vmatprep.subr.mxu0 0.0
        %967 = vmatpush1.msra.mxu0 0.0
        %968 = vmatprep.subr.mxu0 0.0
        %969 = vmatpush1.msra.mxu0 0.0
        %970 = vmatprep.subr.mxu0 0.0
        %971 = vmatpush1.msra.mxu0 0.0
        %972 = vmatprep.subr.mxu0 0.0
        %973 = vmatpush1.msra.mxu0 0.0
        %974 = vmatprep.subr.mxu0 0.0
        %975 = vmatpush1.msra.mxu0 0.0
        %976 = vmatprep.subr.mxu0 0.0
        %977 = vmatpush1.msra.mxu0 0.0
        %978 = vmatprep.subr.mxu0 0.0
        %979 = vmatpush1.msra.mxu0 0.0
        %980 = vmatprep.subr.mxu0 0.0
        %981 = vmatpush1.msra.mxu0 0.0
        %982 = vmatprep.subr.mxu0 0.0
        %983 = vmatpush1.msra.mxu0 0.0
        %984 = vmatprep.subr.mxu0 0.0
        %985 = vmatpush1.msra.mxu0 0.0
        %986 = vmatprep.subr.mxu0 0.0
        %987 = vmatpush1.msra.mxu0 0.0
        %988 = vmatprep.subr.mxu0 0.0
        %989 = vmatpush1.msra.mxu0 0.0
        %990 = vmatprep.subr.mxu0 0.0
        %991 = vmatpush1.msra.mxu0 0.0
        %992 = vmatprep.subr.mxu0 0.0
        %993 = vmatpush1.msra.mxu0 0.0
        %994 = vmatprep.subr.mxu0 0.0
        %995 = vmatpush1.msra.mxu0 0.0
        %996 = vmatprep.subr.mxu0 0.0
        %997 = vmatpush1.msra.mxu0 0.0
        %998 = vmatprep.subr.mxu0 0.0
        %999 = vmatpush1.msra.mxu0 0.0
        %1000 = vmatprep.subr.mxu0 0.0
        %1001 = vmatpush1.msra.mxu0 0.0
        %1002 = vmatprep.subr.mxu0 0.0
        %1003 = vmatpush1.msra.mxu0 0.0
        %1004 = vmatprep.subr.mxu0 0.0
        %1005 = vmatpush1.msra.mxu0 0.0
        %1006 = vmatprep.subr.mxu0 0.0
        %1007 = vmatpush1.msra.mxu0 0.0
        %1008 = vmatprep.subr.mxu0 0.0
        %1009 = vmatpush1.msra.mxu0 0.0
        %1010 = vmatprep.mubr.f32.mxu0 0.0
        %1011 = vmatmul.mubr.f32.gmra.mrb[0].mxu0 %v515
        %v1012 = vpop.f32.mrb[0].mxu0
        %v1013 = vadd.f32 0.0, %v1012
        %v1014 = vpop.f32.mrb[0].mxu0
        %1015 = vmatprep.mubr.f32.mxu0 0.0
        %1016 = vmatmul.mubr.f32.gmra.mrb[0].mxu0 %v518
        %v1017 = vpop.f32.mrb[0].mxu0
        %v1018 = vadd.f32 0.0, %v1017
        %v1019 = vpop.f32.mrb[0].mxu0
        %1020 = vmatprep.mubr.f32.mxu0 0.0
        %1021 = vmatmul.mubr.f32.gmra.mrb[0].mxu0 %v521
        %v1022 = vpop.f32.mrb[0].mxu0
        %v1023 = vadd.f32 0.0, %v1022
        %v1024 = vpop.f32.mrb[0].mxu0
        %1025 = vmatprep.mubr.f32.mxu0 0.0
        %1026 = vmatmul.mubr.f32.gmra.mrb[0].mxu0 %v524
        %v1027 = vpop.f32.mrb[0].mxu0
        %v1028 = vadd.f32 0.0, %v1027
        %v1029 = vpop.f32.mrb[0].mxu0
        %1030 = vmatprep.mubr.f32.mxu0 0.0
        %1031 = vmatmul.mubr.f32.gmra.mrb[0].mxu0 %v527
        %v1032 = vpop.f32.mrb[0].mxu0
        %v1033 = vadd.f32 0.0, %v1032
        %v1034 = vpop.f32.mrb[0].mxu0
        %1035 = vmatprep.mubr.f32.mxu0 0.0
        %1036 = vmatmul.mubr.f32.gmra.mrb[0].mxu0 %v530
        %v1037 = vpop.f32.mrb[0].mxu0
        %v1038 = vadd.f32 0.0, %v1037
        %v1039 = vpop.f32.mrb[0].mxu0
        %1040 = vmatprep.mubr.f32.mxu0 0.0
        %1041 = vmatmul.mubr.f32.gmra.mrb[0].mxu0 %v533
        %v1042 = vpop.f32.mrb[0].mxu0
        %v1043 = vadd.f32 0.0, %v1042
        %v1044 = vpop.f32.mrb[0].mxu0
        %1045 = vmatprep.mubr.f32.mxu0 0.0
        %1046 = vmatmul.mubr.f32.gmra.mrb[0].mxu0 %v536
        %v1047 = vpop.f32.mrb[0].mxu0
        %v1048 = vadd.f32 0.0, %v1047
        %v1049 = vpop.f32.mrb[0].mxu0
        %1050 = vdwg.mxu0
        %v1051 = vmul.f32 %v654, %v1013
        %v1052 = vmul.f32 %v658, %v1018
        %v1053 = vmul.f32 %v662, %v1023
        %v1054 = vmul.f32 %v666, %v1028
        %v1055 = vmul.f32 %v670, %v1033
        %v1056 = vmul.f32 %v674, %v1038
        %v1057 = vmul.f32 %v678, %v1043
        %v1058 = vmul.f32 %v682, %v1048
        %v1059 = vadd.f32 %v1051, %v1052
        %v1060 = vadd.f32 %v1059, %v1053
        %v1061 = vadd.f32 %v1060, %v1054
        %v1062 = vadd.f32 %v1061, %v1055
        %v1063 = vadd.f32 %v1062, %v1056
        %v1064 = vadd.f32 %v1063, %v1057
        %v1065 = vadd.f32 %v1064, %v1058
        %v1066 = vmul.f32 %v705, %v705
        %v1067 = vmul.f32 %v825, %v825
        %v1068 = vmul.f32 %v945, %v945
        %v1069 = vmul.f32 %v1065, %v1065
        %v1070 = vmul.f32 %v705, %v1066
        %v1071 = vmul.f32 %v825, %v1067
        %v1072 = vmul.f32 %v945, %v1068
        %v1073 = vmul.f32 %v1065, %v1069
        %v1074 = vmul.f32 %v1070, 0.044715
        %v1075 = vmul.f32 %v1071, 0.044715
        %v1076 = vmul.f32 %v1072, 0.044715
        %v1077 = vmul.f32 %v1073, 0.044715
        %v1078 = vadd.f32 %v705, %v1074
        %v1079 = vadd.f32 %v825, %v1075
        %v1080 = vadd.f32 %v945, %v1076
        %v1081 = vadd.f32 %v1065, %v1077
        %v1082 = vmul.f32 %v1078, 0.7978846
        %v1083 = vmul.f32 %v1079, 0.7978846
        %v1084 = vmul.f32 %v1080, 0.7978846
        %v1085 = vmul.f32 %v1081, 0.7978846
        %v1086 = vtanh.pop %v1082
        %v1087 = vtanh.pop %v1083
        %v1088 = vtanh.pop %v1084
        %v1089 = vtanh.pop %v1085
        %v1090 = vadd.f32 %v1086, 1.0
        %v1091 = vadd.f32 %v1087, 1.0
        %v1092 = vadd.f32 %v1088, 1.0
        %v1093 = vadd.f32 %v1089, 1.0
        %v1094 = vmul.f32 %v1090, 0.5
        %v1095 = vmul.f32 %v1091, 0.5
        %v1096 = vmul.f32 %v1092, 0.5
        %v1097 = vmul.f32 %v1093, 0.5
        %v1098 = vmul.f32 %v705, %v1094
        %v1099 = vmul.f32 %v825, %v1095
        %v1100 = vmul.f32 %v945, %v1096
        %v1101 = vmul.f32 %v1065, %v1097
        %v1102 = vadd.f32 %v1098, %v418
        %v1103 = vadd.f32 %v1099, %v419
        %v1104 = vadd.f32 %v1100, %v420
        %v1105 = vadd.f32 %v1101, %v421
        %v1106 = vld [vmem:[%s5] sm:$0x1]
        %v1107 = vld [vmem:[%s6] sm:$0x1]
        %1108 = vadd.xlane.f32.xlu0 %v1102
        %v1109 = vpop.xlane.xlu0 %1108
        %1110 = vadd.xlane.f32.xlu0 %v1103
        %v1111 = vpop.xlane.xlu0 %1110
        %1112 = vadd.xlane.f32.xlu0 %v1104
        %v1113 = vpop.xlane.xlu0 %1112
        %1114 = vadd.xlane.f32.xlu0 %v1105
        %v1115 = vpop.xlane.xlu0 %1114
        %v1116 = vmul.f32 %v1109, %v432
        %v1117 = vmul.f32 %v1111, %v432
        %v1118 = vmul.f32 %v1113, %v432
        %v1119 = vmul.f32 %v1115, %v432
        %v1120 = vmul.f32 %v1102, %v1102
        %v1121 = vmul.f32 %v1103, %v1103
        %v1122 = vmul.f32 %v1104, %v1104
        %v1123 = vmul.f32 %v1105, %v1105
        %1124 = vadd.xlane.f32.xlu0 %v1120
        %v1125 = vpop.xlane.xlu0 %1124
        %1126 = vadd.xlane.f32.xlu0 %v1121
        %v1127 = vpop.xlane.xlu0 %1126
        %1128 = vadd.xlane.f32.xlu0 %v1122
        %v1129 = vpop.xlane.xlu0 %1128
        %1130 = vadd.xlane.f32.xlu0 %v1123
        %v1131 = vpop.xlane.xlu0 %1130
        %v1132 = vmul.f32 %v1125, %v432
        %v1133 = vmul.f32 %v1127, %v432
        %v1134 = vmul.f32 %v1129, %v432
        %v1135 = vmul.f32 %v1131, %v432
        %v1136 = vmul.f32 %v1116, %v1116
        %v1137 = vmul.f32 %v1117, %v1117
        %v1138 = vmul.f32 %v1118, %v1118
        %v1139 = vmul.f32 %v1119, %v1119
        %v1140 = vsub.f32 %v1132, %v1136
        %v1141 = vsub.f32 %v1133, %v1137
        %v1142 = vsub.f32 %v1134, %v1138
        %v1143 = vsub.f32 %v1135, %v1139
        %v1144 = vsub.f32 %v1102, %v1116
        %v1145 = vsub.f32 %v1103, %v1117
        %v1146 = vsub.f32 %v1104, %v1118
        %v1147 = vsub.f32 %v1105, %v1119
        %v1148 = vadd.f32 %v1140, 1e-05
        %v1149 = vadd.f32 %v1141, 1e-05
        %v1150 = vadd.f32 %v1142, 1e-05
        %v1151 = vadd.f32 %v1143, 1e-05
        %v1152 = vrsqrt.pop %v1148
        %v1153 = vrsqrt.pop %v1149
        %v1154 = vrsqrt.pop %v1150
        %v1155 = vrsqrt.pop %v1151
        %v1156 = vmul.f32 %v1144, %v1152
        %v1157 = vmul.f32 %v1145, %v1153
        %v1158 = vmul.f32 %v1146, %v1154
        %v1159 = vmul.f32 %v1147, %v1155
        %v1161 = vlaneseq
        %v1162 = vshrl.u32 %v1161, 7
        %v1163 = vsub.s32 0, %v1162
        %v1164 = vrot.slane %v1106, %v1163
        %v1166 = vmul.f32 %v1156, %v1164
        %v1167 = vmul.f32 %v1157, %v1164
        %v1168 = vmul.f32 %v1158, %v1164
        %v1169 = vmul.f32 %v1159, %v1164
        %v1171 = vlaneseq
        %v1172 = vshrl.u32 %v1171, 7
        %v1173 = vsub.s32 0, %v1172
        %v1174 = vrot.slane %v1107, %v1173
        %v1176 = vadd.f32 %v1166, %v1174
        %v1177 = vadd.f32 %v1167, %v1174
        %v1178 = vadd.f32 %v1168, %v1174
        %v1179 = vadd.f32 %v1169, %v1174
        %v1180 = vld [vmem:[#allocation2] sm:$0xff]
        %v1181 = vld [vmem:[#allocation2 + $0x8] sm:$0xff]
        %v1182 = vld [vmem:[#allocation2 + $0x10] sm:$0xff]
        %v1183 = vld [vmem:[#allocation2 + $0x18] sm:$0xff]
        %v1184 = vld [vmem:[#allocation2 + $0x20] sm:$0xff]
        %v1185 = vld [vmem:[#allocation2 + $0x28] sm:$0xff]
        %v1186 = vld [vmem:[#allocation2 + $0x30] sm:$0xff]
        %v1187 = vld [vmem:[#allocation2 + $0x38] sm:$0xff]
        %v1188 = vld [vmem:[#allocation2 + $0x40] sm:$0xff]
        %v1189 = vld [vmem:[#allocation2 + $0x48] sm:$0xff]
        %v1190 = vld [vmem:[#allocation2 + $0x50] sm:$0xff]
        %v1191 = vld [vmem:[#allocation2 + $0x58] sm:$0xff]
        %v1192 = vld [vmem:[#allocation2 + $0x60] sm:$0xff]
        %v1193 = vld [vmem:[#allocation2 + $0x68] sm:$0xff]
        %v1194 = vld [vmem:[#allocation2 + $0x70] sm:$0xff]
        %v1195 = vld [vmem:[#allocation2 + $0x78] sm:$0xff]
        %v1196 = vld [vmem:[#allocation5] sm:$0xff]
        %v1197 = vld [vmem:[#allocation5 + $0x8] sm:$0xff]
        %v1198 = vld [vmem:[#allocation5 + $0x10] sm:$0xff]
        %v1199 = vld [vmem:[#allocation5 + $0x18] sm:$0xff]
        %v1200 = vld [vmem:[#allocation5 + $0x20] sm:$0xff]
        %v1201 = vld [vmem:[#allocation5 + $0x28] sm:$0xff]
        %v1202 = vld [vmem:[#allocation5 + $0x30] sm:$0xff]
        %v1203 = vld [vmem:[#allocation5 + $0x38] sm:$0xff]
        %v1204 = vld [vmem:[#allocation5 + $0x40] sm:$0xff]
        %v1205 = vld [vmem:[#allocation5 + $0x48] sm:$0xff]
        %v1206 = vld [vmem:[#allocation5 + $0x50] sm:$0xff]
        %v1207 = vld [vmem:[#allocation5 + $0x58] sm:$0xff]
        %v1208 = vld [vmem:[#allocation5 + $0x60] sm:$0xff]
        %v1209 = vld [vmem:[#allocation5 + $0x68] sm:$0xff]
        %v1210 = vld [vmem:[#allocation5 + $0x70] sm:$0xff]
        %v1211 = vld [vmem:[#allocation5 + $0x78] sm:$0xff]
        %v1212 = vld [vmem:[%s8] sm:$0x1]
        %v1214 = vlaneseq
        %v1215 = vshrl.u32 %v1214, 7
        %v1216 = vsub.s32 0, %v1215
        %v1217 = vrot.slane %v1212, %v1216
        %1219 = vmatprep.subr.mxu0 0.0
        %1220 = vmatpush1.msra.mxu0 %v1180
        %1221 = vmatprep.subr.mxu0 0.0
        %1222 = vmatpush1.msra.mxu0 %v1181
        %1223 = vmatprep.subr.mxu0 0.0
        %1224 = vmatpush1.msra.mxu0 %v1182
        %1225 = vmatprep.subr.mxu0 0.0
        %1226 = vmatpush1.msra.mxu0 %v1183
        %1227 = vmatprep.subr.mxu0 0.0
        %1228 = vmatpush1.msra.mxu0 %v1184
        %1229 = vmatprep.subr.mxu0 0.0
        %1230 = vmatpush1.msra.mxu0 %v1185
        %1231 = vmatprep.subr.mxu0 0.0
        %1232 = vmatpush1.msra.mxu0 %v1186
        %1233 = vmatprep.subr.mxu0 0.0
        %1234 = vmatpush1.msra.mxu0 %v1187
        %1235 = vmatprep.subr.mxu0 0.0
        %1236 = vmatpush1.msra.mxu0 %v1188
        %1237 = vmatprep.subr.mxu0 0.0
        %1238 = vmatpush1.msra.mxu0 %v1189
        %1239 = vmatprep.subr.mxu0 0.0
        %1240 = vmatpush1.msra.mxu0 %v1190
        %1241 = vmatprep.subr.mxu0 0.0
        %1242 = vmatpush1.msra.mxu0 %v1191
        %1243 = vmatprep.subr.mxu0 0.0
        %1244 = vmatpush1.msra.mxu0 %v1192
        %1245 = vmatprep.subr.mxu0 0.0
        %1246 = vmatpush1.msra.mxu0 %v1193
        %1247 = vmatprep.subr.mxu0 0.0
        %1248 = vmatpush1.msra.mxu0 %v1194
        %1249 = vmatprep.subr.mxu0 0.0
        %1250 = vmatpush1.msra.mxu0 %v1195
        %1251 = vmatprep.subr.mxu0 0.0
        %1252 = vmatpush1.msra.mxu0 0.0
        %1253 = vmatprep.subr.mxu0 0.0
        %1254 = vmatpush1.msra.mxu0 0.0
        %1255 = vmatprep.subr.mxu0 0.0
        %1256 = vmatpush1.msra.mxu0 0.0
        %1257 = vmatprep.subr.mxu0 0.0
        %1258 = vmatpush1.msra.mxu0 0.0
        %1259 = vmatprep.subr.mxu0 0.0
        %1260 = vmatpush1.msra.mxu0 0.0
        %1261 = vmatprep.subr.mxu0 0.0
        %1262 = vmatpush1.msra.mxu0 0.0
        %1263 = vmatprep.subr.mxu0 0.0
        %1264 = vmatpush1.msra.mxu0 0.0
        %1265 = vmatprep.subr.mxu0 0.0
        %1266 = vmatpush1.msra.mxu0 0.0
        %1267 = vmatprep.subr.mxu0 0.0
        %1268 = vmatpush1.msra.mxu0 0.0
        %1269 = vmatprep.subr.mxu0 0.0
        %1270 = vmatpush1.msra.mxu0 0.0
        %1271 = vmatprep.subr.mxu0 0.0
        %1272 = vmatpush1.msra.mxu0 0.0
        %1273 = vmatprep.subr.mxu0 0.0
        %1274 = vmatpush1.msra.mxu0 0.0
        %1275 = vmatprep.subr.mxu0 0.0
        %1276 = vmatpush1.msra.mxu0 0.0
        %1277 = vmatprep.subr.mxu0 0.0
        %1278 = vmatpush1.msra.mxu0 0.0
        %1279 = vmatprep.subr.mxu0 0.0
        %1280 = vmatpush1.msra.mxu0 0.0
        %1281 = vmatprep.subr.mxu0 0.0
        %1282 = vmatpush1.msra.mxu0 0.0
        %1283 = vmatprep.mubr.f32.mxu0 0.0
        %1284 = vmatmul.mubr.f32.gmra.mrb[0].mxu0 %v1176
        %v1285 = vpop.f32.mrb[0].mxu0
        %v1286 = vadd.f32 %v1217, %v1285
        %v1287 = vpop.f32.mrb[0].mxu0
        %1288 = vmatprep.mubr.f32.mxu0 0.0
        %1289 = vmatmul.mubr.f32.gmra.mrb[0].mxu0 %v1177
        %v1290 = vpop.f32.mrb[0].mxu0
        %v1291 = vadd.f32 %v1217, %v1290
        %v1292 = vpop.f32.mrb[0].mxu0
        %1293 = vmatprep.mubr.f32.mxu0 0.0
        %1294 = vmatmul.mubr.f32.gmra.mrb[0].mxu0 %v1178
        %v1295 = vpop.f32.mrb[0].mxu0
        %v1296 = vadd.f32 %v1217, %v1295
        %v1297 = vpop.f32.mrb[0].mxu0
        %1298 = vmatprep.mubr.f32.mxu0 0.0
        %1299 = vmatmul.mubr.f32.gmra.mrb[0].mxu0 %v1179
        %v1300 = vpop.f32.mrb[0].mxu0
        %v1301 = vadd.f32 %v1217, %v1300
        %v1302 = vpop.f32.mrb[0].mxu0
        %1303 = vdwg.mxu0
        %v1304 = vmul.f32 %v1286, %v1286
        %v1305 = vmul.f32 %v1291, %v1291
        %v1306 = vmul.f32 %v1296, %v1296
        %v1307 = vmul.f32 %v1301, %v1301
        %v1308 = vmul.f32 %v1286, %v1304
        %v1309 = vmul.f32 %v1291, %v1305
        %v1310 = vmul.f32 %v1296, %v1306
        %v1311 = vmul.f32 %v1301, %v1307
        %v1312 = vmul.f32 %v1308, 0.044715
        %v1313 = vmul.f32 %v1309, 0.044715
        %v1314 = vmul.f32 %v1310, 0.044715
        %v1315 = vmul.f32 %v1311, 0.044715
        %v1316 = vadd.f32 %v1286, %v1312
        %v1317 = vadd.f32 %v1291, %v1313
        %v1318 = vadd.f32 %v1296, %v1314
        %v1319 = vadd.f32 %v1301, %v1315
        %v1320 = vmul.f32 %v1316, 0.7978846
        %v1321 = vmul.f32 %v1317, 0.7978846
        %v1322 = vmul.f32 %v1318, 0.7978846
        %v1323 = vmul.f32 %v1319, 0.7978846
        %v1324 = vtanh.pop %v1320
        %v1325 = vtanh.pop %v1321
        %v1326 = vtanh.pop %v1322
        %v1327 = vtanh.pop %v1323
        %v1328 = vadd.f32 %v1324, 1.0
        %v1329 = vadd.f32 %v1325, 1.0
        %v1330 = vadd.f32 %v1326, 1.0
        %v1331 = vadd.f32 %v1327, 1.0
        %v1332 = vmul.f32 %v1328, 0.5
        %v1333 = vmul.f32 %v1329, 0.5
        %v1334 = vmul.f32 %v1330, 0.5
        %v1335 = vmul.f32 %v1331, 0.5
        %v1336 = vmul.f32 %v1286, %v1332
        %v1337 = vmul.f32 %v1291, %v1333
        %v1338 = vmul.f32 %v1296, %v1334
        %v1339 = vmul.f32 %v1301, %v1335
        %v1340 = vld [vmem:[%s10] sm:$0x1]
        %v1342 = vlaneseq
        %v1343 = vshrl.u32 %v1342, 7
        %v1344 = vsub.s32 0, %v1343
        %v1345 = vrot.slane %v1340, %v1344
        %1347 = vmatprep.subr.mxu0 0.0
        %1348 = vmatpush1.msra.mxu0 %v1196
        %1349 = vmatprep.subr.mxu0 0.0
        %1350 = vmatpush1.msra.mxu0 %v1197
        %1351 = vmatprep.subr.mxu0 0.0
        %1352 = vmatpush1.msra.mxu0 %v1198
        %1353 = vmatprep.subr.mxu0 0.0
        %1354 = vmatpush1.msra.mxu0 %v1199
        %1355 = vmatprep.subr.mxu0 0.0
        %1356 = vmatpush1.msra.mxu0 %v1200
        %1357 = vmatprep.subr.mxu0 0.0
        %1358 = vmatpush1.msra.mxu0 %v1201
        %1359 = vmatprep.subr.mxu0 0.0
        %1360 = vmatpush1.msra.mxu0 %v1202
        %1361 = vmatprep.subr.mxu0 0.0
        %1362 = vmatpush1.msra.mxu0 %v1203
        %1363 = vmatprep.subr.mxu0 0.0
        %1364 = vmatpush1.msra.mxu0 %v1204
        %1365 = vmatprep.subr.mxu0 0.0
        %1366 = vmatpush1.msra.mxu0 %v1205
        %1367 = vmatprep.subr.mxu0 0.0
        %1368 = vmatpush1.msra.mxu0 %v1206
        %1369 = vmatprep.subr.mxu0 0.0
        %1370 = vmatpush1.msra.mxu0 %v1207
        %1371 = vmatprep.subr.mxu0 0.0
        %1372 = vmatpush1.msra.mxu0 %v1208
        %1373 = vmatprep.subr.mxu0 0.0
        %1374 = vmatpush1.msra.mxu0 %v1209
        %1375 = vmatprep.subr.mxu0 0.0
        %1376 = vmatpush1.msra.mxu0 %v1210
        %1377 = vmatprep.subr.mxu0 0.0
        %1378 = vmatpush1.msra.mxu0 %v1211
        %1379 = vmatprep.subr.mxu0 0.0
        %1380 = vmatpush1.msra.mxu0 0.0
        %1381 = vmatprep.subr.mxu0 0.0
        %1382 = vmatpush1.msra.mxu0 0.0
        %1383 = vmatprep.subr.mxu0 0.0
        %1384 = vmatpush1.msra.mxu0 0.0
        %1385 = vmatprep.subr.mxu0 0.0
        %1386 = vmatpush1.msra.mxu0 0.0
        %1387 = vmatprep.subr.mxu0 0.0
        %1388 = vmatpush1.msra.mxu0 0.0
        %1389 = vmatprep.subr.mxu0 0.0
        %1390 = vmatpush1.msra.mxu0 0.0
        %1391 = vmatprep.subr.mxu0 0.0
        %1392 = vmatpush1.msra.mxu0 0.0
        %1393 = vmatprep.subr.mxu0 0.0
        %1394 = vmatpush1.msra.mxu0 0.0
        %1395 = vmatprep.subr.mxu0 0.0
        %1396 = vmatpush1.msra.mxu0 0.0
        %1397 = vmatprep.subr.mxu0 0.0
        %1398 = vmatpush1.msra.mxu0 0.0
        %1399 = vmatprep.subr.mxu0 0.0
        %1400 = vmatpush1.msra.mxu0 0.0
        %1401 = vmatprep.subr.mxu0 0.0
        %1402 = vmatpush1.msra.mxu0 0.0
        %1403 = vmatprep.subr.mxu0 0.0
        %1404 = vmatpush1.msra.mxu0 0.0
        %1405 = vmatprep.subr.mxu0 0.0
        %1406 = vmatpush1.msra.mxu0 0.0
        %1407 = vmatprep.subr.mxu0 0.0
        %1408 = vmatpush1.msra.mxu0 0.0
        %1409 = vmatprep.subr.mxu0 0.0
        %1410 = vmatpush1.msra.mxu0 0.0
        %1411 = vmatprep.mubr.f32.mxu0 0.0
        %1412 = vmatmul.mubr.f32.gmra.mrb[0].mxu0 %v1336
        %v1413 = vpop.f32.mrb[0].mxu0
        %v1414 = vadd.f32 %v1345, %v1413
        %v1415 = vpop.f32.mrb[0].mxu0
        %1416 = vmatprep.mubr.f32.mxu0 0.0
        %1417 = vmatmul.mubr.f32.gmra.mrb[0].mxu0 %v1337
        %v1418 = vpop.f32.mrb[0].mxu0
        %v1419 = vadd.f32 %v1345, %v1418
        %v1420 = vpop.f32.mrb[0].mxu0
        %1421 = vmatprep.mubr.f32.mxu0 0.0
        %1422 = vmatmul.mubr.f32.gmra.mrb[0].mxu0 %v1338
        %v1423 = vpop.f32.mrb[0].mxu0
        %v1424 = vadd.f32 %v1345, %v1423
        %v1425 = vpop.f32.mrb[0].mxu0
        %1426 = vmatprep.mubr.f32.mxu0 0.0
        %1427 = vmatmul.mubr.f32.gmra.mrb[0].mxu0 %v1339
        %v1428 = vpop.f32.mrb[0].mxu0
        %v1429 = vadd.f32 %v1345, %v1428
        %v1430 = vpop.f32.mrb[0].mxu0
        %1431 = vdwg.mxu0
        %v1432 = vadd.f32 %v1414, %v1102
        %v1433 = vadd.f32 %v1419, %v1103
        %v1434 = vadd.f32 %v1424, %v1104
        %v1435 = vadd.f32 %v1429, %v1105
        %1436 = vst [vmem:[%s410] sm:$0xff] %v1432
        %1437 = vst [vmem:[%s410 + $0x8] sm:$0xff] %v1433
        %1438 = vst [vmem:[%s410 + $0x10] sm:$0xff] %v1434
        %1439 = vst [vmem:[%s410 + $0x18] sm:$0xff] %v1435
        %s1440 = sand.u32 %s271, 1
        %s1441 = scalar_lea.sflag [#allocation4], %s1440
        %s1442 = sand.u32 %s271, 1
        %s1443 = smul.addr %s1442, 32
        %s1444 = scalar_lea.vmem [#allocation7], %s1443
        // Predicated region
        $region73: #{tpu_custom_call.1} parent=63 // pred_check
          %p1445 = pneg %p281
        $region74: #{tpu_custom_call.1} parent=63 // pred_check_branch
          %1447 = sbr.rel (%p1445) target = $region76
        $region75: #{tpu_custom_call.1} parent=63 // pred_region
          %s1448 = smul.u32 4, %s27
          %s1450 = ssub.s32 512, 512
          %1451 = vsyncadd %s1441, %s1450
          %s1452 = smul.addr %s1448, 128
          %s1453 = scalar_lea.hbm %s11, %s1452
          %s1454 = sshll.u32 %s1444, 4
          %s1455 = int_to_ptr.vmem [resolvable:$true] %s1454
          %1460 = dma.vmem_to_hbm [thread:$0]  %s1455, 512, %s1453, %s1441, 128, 128, 8
        $region76: #{tpu_custom_call.1} parent=63 // pred_fallthru
          _
      $region64: #{tpu_custom_call.1} parent=5 // pred_fallthru
        _
      %p1461 = scmp.le.s32.totalorder 2, %s22
      // Predicated region
      $region77: #{tpu_custom_call.1} parent=5 // pred_check
        %p1462 = pneg %p1461
      $region78: #{tpu_custom_call.1} parent=5 // pred_check_branch
        %1464 = sbr.rel (%p1462) target = $region80
      $region79: #{tpu_custom_call.1} parent=5 // pred_region
        %s1465 = ssub.s32 %s22, 2
        // Predicated region
        $region81: #{tpu_custom_call.1} parent=79 // pred_check
          %p1466 = pneg %p287
        $region82: #{tpu_custom_call.1} parent=79 // pred_check_branch
          %1468 = sbr.rel (%p1466) target = $region84
        $region83: #{tpu_custom_call.1} parent=79 // pred_region
          %s1469 = sand.u32 %s272, 1
          %s1470 = scalar_lea.sflag [#allocation4], %s1469
          %s1471 = sand.u32 %s272, 1
          %s1472 = smul.addr %s1471, 32
          %s1473 = scalar_lea.vmem [#allocation7], %s1472
          %1474 = dma.done %s1470, 512
        $region84: #{tpu_custom_call.1} parent=79 // pred_fallthru
          _
      $region80: #{tpu_custom_call.1} parent=5 // pred_fallthru
        _
    $region6: #{tpu_custom_call.1} parent=1 // loop_footer
      %s26 = sadd.s32 1, %s22
    $region7: #{tpu_custom_call.1} parent=1 // loop_footer_branch
      %21 = sbr.rel target = $region3
    $region8: #{tpu_custom_call.1} parent=1 // loop_exit
      _
    %1475 = vsyncpa [#allocation3], 1
    %s1476 = scalar_lea.sflag [#allocation3], 1
    %1477 = vsyncpa %s1476, 1
    %1478 = vsyncpa [#allocation6], 1
    %1479 = vsyncpa [#allocation4], 1
    %s1480 = scalar_lea.sflag [#allocation4], 1
    %1481 = vsyncpa %s1480, 1

</llo_original>
